<compile_context>
chip_gen: v5e
topology: v5e:2x2
jax: 0.10.0
libtpu: 0.0.40
codegen_flags: <defaults>
</compile_context>

<pallas_src>
import functools

import jax
import jax.numpy as jnp
import numpy as np
from jax.experimental import pallas as pl
from jax.experimental.pallas import tpu as pltpu


def _elu(x):
    # F.elu (alpha=1).  exp(min(x,0))-1 keeps the EUP-friendly exp form; abs
    # error vs expm1 is ~1e-7 in f32, well inside the test tolerance.
    return jnp.where(x > 0, x, jnp.exp(jnp.minimum(x, 0.0)) - 1.0)


def convnet_kernel(x_ref, ws_ref, bs_ref, band_ref, btc_ref, pool_ref, pmat_ref,
                   w2_ref, b2c_ref, mask_ref, csel_ref, exp_ref, sall_ref,
                   w3e_ref, ksum_ref, b3c_ref,
                   out_ref, out1_ref, *, n1):
    f32 = jnp.float32

    # ---- stratified_layerNorm(input, B): n_subs == 1, single input channel
    # => whole-tensor stats (unbiased std + 1e-3, like torch .std()).
    # TODO(synk): stratified groups (n_subs > 1) are not implemented.
    x = x_ref[...]                                          # (C, B*T)
    n0 = x.shape[0] * x.shape[1]
    mu0 = jnp.sum(x) / n0
    var0 = jnp.maximum((jnp.sum(x * x) - n0 * mu0 * mu0) / (n0 - 1), 0.0)
    xn = (x - mu0) * (1.0 / (jnp.sqrt(var0) + 1e-3))

    # ---- spatialConv: single (n_sf, C) @ (C, B*T) MXU contraction.
    s = jnp.dot(ws_ref[...], xn, preferred_element_type=f32) + bs_ref[...]

    # ---- timeConv (all time filters at once): banded-matrix matmul.
    # Output columns are (tf, b, tau) with tau zero-padded to 128 lanes so the
    # out1 store is fully lane-dense.
    t1 = jnp.dot(s, band_ref[...], preferred_element_type=f32) + btc_ref[...]
    out1_ref[...] = t1                                      # out1 = out.clone()

    e = _elu(t1)

    # ---- AvgPool2d((1, 24)): block-diagonal pooling matrix, one push.
    pooled = jnp.dot(e, pool_ref[...], preferred_element_type=f32)  # (n_sf, n_tf*B*Tp)

    # ---- stratified_layerNorm(out, B): per-time-filter stats over (B, n_sf, Tp)
    # computed with one matmul against a per-filter averaging matrix P.
    mu = jnp.sum(jnp.dot(pooled, pmat_ref[...], preferred_element_type=f32),
                 axis=0, keepdims=True)                     # per-tf mean per col
    msq = jnp.sum(jnp.dot(pooled * pooled, pmat_ref[...],
                          preferred_element_type=f32), axis=0, keepdims=True)
    var = jnp.maximum((msq - mu * mu) * (n1 / (n1 - 1.0)), 0.0)
    pn = (pooled - mu) * (1.0 / (jnp.sqrt(var) + 1e-3))     # (n_sf, n_tf*B*Tp)

    # ---- spatialConv2 (grouped over time filters) + ELU: dense matmul over
    # all (tf, m) output channels, then a structural mask + column-collapse
    # matmul selects the matching time-filter block (no loops, no concat).
    c2f = jnp.dot(w2_ref[...], pn, preferred_element_type=f32)       # (n_tf*mF, n_tf*B*Tp)
    c2 = _elu(jnp.dot(c2f * mask_ref[...], csel_ref[...],
                      preferred_element_type=f32) + b2c_ref[...])    # (n_tf*mF, B*Tp)

    # ---- timeConv2 (grouped, kernel (1,4), valid): expand rows to the final
    # output channels, gather the 4 shifted taps with one matmul, apply the
    # per-channel tap weights elementwise, and sum the taps with one matmul.
    c2r = jnp.dot(exp_ref[...], c2, preferred_element_type=f32)      # (n_out, B*Tp)
    shifted = jnp.dot(c2r, sall_ref[...], preferred_element_type=f32)  # (n_out, kw*B*Tp2)
    c3 = jnp.dot(shifted * w3e_ref[...], ksum_ref[...],
                 preferred_element_type=f32) + b3c_ref[...]
    out_ref[...] = _elu(c3)                                          # (n_out, B*Tp2)


def convnet_forward(x, params):
    ws, bs, wt, bt, w2, b2, w3, b3 = params
    B, _, C, T = x.shape
    n_sf = ws.shape[0]
    n_tf, tl = wt.shape
    mF = w2.shape[0] // n_tf
    kw = w3.shape[1]
    pad = (tl - 1) // 2
    T_out = T + 2 * pad - tl + 1
    Tp = T_out // 24
    Tp2 = Tp - kw + 1
    n_out = n_tf * mF * mF
    Tpad = ((T_out + 127) // 128) * 128          # lane-dense padded time length
    btp, btp2 = B * Tp, B * Tp2
    n1 = B * n_sf * Tp
    f32 = jnp.float32

    # -------- glue (pure XLA): layouts + structural / banded matrices --------
    xt = x[:, 0].transpose(1, 0, 2).reshape(C, B * T)                 # (C, B*T)

    # timeConv as a banded matrix: rows (b, t) of s -> cols (tf, b, tau_pad).
    t_idx = np.arange(T)
    tau_idx = np.arange(Tpad)
    k_mat = t_idx[:, None] - tau_idx[None, :] + pad                   # tap index
    valid = (k_mat >= 0) & (k_mat < tl) & (tau_idx[None, :] < T_out)
    band_blk = jnp.where(jnp.asarray(valid),
                         wt[:, np.clip(k_mat, 0, tl - 1)], 0.0)       # (n_tf, T, Tpad)
    band = jnp.einsum('ftu,bc->btfcu', band_blk,
                      jnp.eye(B, dtype=f32)).reshape(B * T, n_tf * B * Tpad)
    bt_cols = jnp.repeat(bt, B * Tpad)[None, :]                       # (1, n_tf*B*Tpad)

    # AvgPool2d((1, 24)) as a block-diagonal (tf, b)-wise pooling matrix.
    pool_np = np.zeros((n_tf * B * Tpad, n_tf * B * Tp), np.float32)
    for g in range(n_tf * B):
        for p in range(Tp):
            pool_np[g * Tpad + 24 * p: g * Tpad + 24 * (p + 1), g * Tp + p] = 1.0 / 24.0

    # Per-time-filter averaging matrix for stratified_layerNorm(middle1).
    pmat_np = (np.kron(np.eye(n_tf), np.ones((btp, btp))) / n1).astype(np.float32)

    # Grouped head: mask / column-collapse / row-expansion / tap-shift /
    # tap-weight / tap-sum matrices (all tiny, built once in the wrapper).
    b2c = b2.reshape(-1, 1)
    mask_np = np.kron(np.eye(n_tf), np.ones((mF, btp))).astype(np.float32)   # (n_tf*mF, n_tf*B*Tp)
    csel_np = np.tile(np.eye(btp, dtype=np.float32), (n_tf, 1))              # (n_tf*B*Tp, B*Tp)
    exp_np = np.repeat(np.eye(n_tf * mF, dtype=np.float32), mF, axis=0)      # (n_out, n_tf*mF)
    sall_np = np.zeros((btp, kw * btp2), np.float32)                         # tap-shift selection
    for k in range(kw):
        for b in range(B):
            for p2 in range(Tp2):
                sall_np[b * Tp + p2 + k, k * btp2 + b * Tp2 + p2] = 1.0
    w3e = jnp.repeat(w3, btp2, axis=1)                                       # (n_out, kw*B*Tp2)
    ksum_np = np.tile(np.eye(btp2, dtype=np.float32), (kw, 1))               # (kw*B*Tp2, B*Tp2)
    b3c = b3.reshape(-1, 1)

    kernel = functools.partial(convnet_kernel, n1=float(n1))
    vmem = pl.BlockSpec(memory_space=pltpu.MemorySpace.VMEM)

    out_k, out1_k = pl.pallas_call(
        kernel,
        in_specs=[vmem] * 16,
        out_specs=[vmem, vmem],
        out_shape=[
            jax.ShapeDtypeStruct((n_out, btp2), f32),
            jax.ShapeDtypeStruct((n_sf, n_tf * B * Tpad), f32),
        ],
    )(xt, ws, bs, band, bt_cols, jnp.asarray(pool_np), jnp.asarray(pmat_np),
      w2, b2c, jnp.asarray(mask_np), jnp.asarray(csel_np), jnp.asarray(exp_np),
      jnp.asarray(sall_np), w3e, jnp.asarray(ksum_np), b3c)

    # Back to PyTorch layouts (pure XLA, outside the kernel).
    out = out_k.reshape(n_out, B, Tp2).transpose(1, 0, 2).reshape(B, n_out, 1, Tp2)
    out1 = out1_k.reshape(n_sf, n_tf, B, Tpad)[..., :T_out].transpose(2, 1, 0, 3)
    return out, out1


def init_params(key, n_channs, n_sf, n_tf, tl, mF):
    ks = jax.random.split(key, 8)
    f = lambda k, shape, s=0.2: (s * jax.random.normal(k, shape)).astype(jnp.float32)
    ws = f(ks[0], (n_sf, n_channs))          # spatialConv.weight  (n_sf,1,n_channs,1)
    bs = f(ks[1], (n_sf, 1))                 # spatialConv.bias
    wt = f(ks[2], (n_tf, tl))                # timeConv.weight     (n_tf,1,1,tl)
    bt = f(ks[3], (n_tf,))                   # timeConv.bias
    w2 = f(ks[4], (n_tf * mF, n_sf))         # spatialConv2.weight (n_tf*mF,1,n_sf,1)
    b2 = f(ks[5], (n_tf * mF,))              # spatialConv2.bias
    w3 = f(ks[6], (n_tf * mF * mF, 4))       # timeConv2.weight    (n_tf*mF*mF,1,1,4)
    b3 = f(ks[7], (n_tf * mF * mF,))         # timeConv2.bias
    return ws, bs, wt, bt, w2, b2, w3, b3


def reference_forward(x, params):
    """Pure-JAX reference mirroring the PyTorch forward semantics."""
    ws, bs, wt, bt, w2, b2, w3, b3 = params
    B, _, C, T = x.shape
    n_sf = ws.shape[0]
    n_tf, tl = wt.shape
    mF = w2.shape[0] // n_tf
    pad = (tl - 1) // 2
    T_out = T + 2 * pad - tl + 1
    Tp = T_out // 24
    Tp2 = Tp - 3

    # initial stratified layer norm (n_subs = 1, single channel)
    xn = (x - jnp.mean(x)) / (jnp.std(x, ddof=1) + 1e-3)
    x3 = xn[:, 0]

    s = jnp.einsum('fc,bct->bft', ws, x3) + bs[None, :, :]
    sp = jnp.pad(s, ((0, 0), (0, 0), (pad, pad)))
    t1 = jnp.stack(
        [sum(wt[tf, k] * sp[:, :, k:k + T_out] for k in range(tl)) + bt[tf]
         for tf in range(n_tf)], axis=1)                       # (B,n_tf,n_sf,T_out)
    out1 = t1
    e = jax.nn.elu(t1)
    pooled = e[..., :Tp * 24].reshape(B, n_tf, n_sf, Tp, 24).mean(-1)

    mu1 = pooled.mean(axis=(0, 2, 3), keepdims=True)
    sd1 = pooled.std(axis=(0, 2, 3), keepdims=True, ddof=1)
    pn = (pooled - mu1) / (sd1 + 1e-3)

    w2r = w2.reshape(n_tf, mF, n_sf)
    c2 = jnp.einsum('gms,bgst->bgmt', w2r, pn) + b2.reshape(n_tf, mF)[None, :, :, None]
    c2 = jax.nn.elu(c2).reshape(B, n_tf * mF, Tp)

    w3r = w3.reshape(n_tf * mF, mF, 4)
    c3 = sum(w3r[:, :, k][None, :, :, None] * c2[:, :, None, k:k + Tp2]
             for k in range(4))
    c3 = c3 + b3.reshape(n_tf * mF, mF)[None, :, :, None]
    c3 = jax.nn.elu(c3).reshape(B, n_tf * mF * mF, 1, Tp2)
    return c3, out1


if __name__ == "__main__":
    # Small shapes consistent with the module: (B, 1, n_channs, T)
    B, n_channs, T = 2, 16, 120
    n_sf, n_tf, tl, mF = 4, 4, 5, 2

    key = jax.random.PRNGKey(0)
    kx, kp = jax.random.split(key)
    x = jax.random.normal(kx, (B, 1, n_channs, T), jnp.float32)
    params = init_params(kp, n_channs, n_sf, n_tf, tl, mF)

    out, out1 = convnet_forward(x, params)
    jax.block_until_ready((out, out1))

    ref_out, ref_out1 = reference_forward(x, params)
    np.testing.assert_allclose(np.asarray(out), np.asarray(ref_out),
                               rtol=1e-4, atol=1e-4)
    np.testing.assert_allclose(np.asarray(out1), np.asarray(ref_out1),
                               rtol=1e-4, atol=1e-4)

    assert out.shape == (B, n_tf * mF * mF, 1, (T // 24) - 3)
    assert out1.shape == (B, n_tf, n_sf, T)

    print("KERNEL_OK")
</pallas_src>

<mosaic_0001>
module attributes {stable_mosaic.version = 11 : i64} {
  func.func @convnet_kernel(%arg0: memref<16x240xf32, #tpu.memory_space<vmem>>, %arg1: memref<4x16xf32, #tpu.memory_space<vmem>>, %arg2: memref<4x1xf32, #tpu.memory_space<vmem>>, %arg3: memref<240x1024xf32, #tpu.memory_space<vmem>>, %arg4: memref<1x1024xf32, #tpu.memory_space<vmem>>, %arg5: memref<1024x40xf32, #tpu.memory_space<vmem>>, %arg6: memref<40x40xf32, #tpu.memory_space<vmem>>, %arg7: memref<8x4xf32, #tpu.memory_space<vmem>>, %arg8: memref<8x1xf32, #tpu.memory_space<vmem>>, %arg9: memref<8x40xf32, #tpu.memory_space<vmem>>, %arg10: memref<40x10xf32, #tpu.memory_space<vmem>>, %arg11: memref<16x8xf32, #tpu.memory_space<vmem>>, %arg12: memref<10x16xf32, #tpu.memory_space<vmem>>, %arg13: memref<16x16xf32, #tpu.memory_space<vmem>>, %arg14: memref<16x4xf32, #tpu.memory_space<vmem>>, %arg15: memref<16x1xf32, #tpu.memory_space<vmem>>, %arg16: memref<16x4xf32, #tpu.memory_space<vmem>>, %arg17: memref<4x1024xf32, #tpu.memory_space<vmem>>) attributes {dimension_semantics = [], scalar_prefetch = 0 : i64, scratch_operands = 0 : i64, tpu.core_type = #tpu.core_type<tc>} {
    %c0 = arith.constant 0 : index
    %c0_0 = arith.constant 0 : index
    %0 = vector.load %arg0[%c0, %c0_0] : memref<16x240xf32, #tpu.memory_space<vmem>>, vector<16x240xf32>
    %1 = vector.shape_cast %0 : vector<16x240xf32> to vector<1x16x240xf32>
    %cst = arith.constant dense<0.000000e+00> : vector<1xf32>
    %2 = vector.multi_reduction <add>, %1, %cst [1, 2] : vector<1x16x240xf32> to vector<1xf32>
    %3 = vector.shape_cast %2 : vector<1xf32> to vector<1x1x1xf32>
    %4 = vector.extract %3[0, 0, 0] : f32 from vector<1x1x1xf32>
    %cst_1 = arith.constant 3.840000e+03 : f32
    %5 = arith.divf %4, %cst_1 : f32
    %6 = arith.mulf %0, %0 : vector<16x240xf32>
    %7 = vector.shape_cast %6 : vector<16x240xf32> to vector<1x16x240xf32>
    %cst_2 = arith.constant dense<0.000000e+00> : vector<1xf32>
    %8 = vector.multi_reduction <add>, %7, %cst_2 [1, 2] : vector<1x16x240xf32> to vector<1xf32>
    %9 = vector.shape_cast %8 : vector<1xf32> to vector<1x1x1xf32>
    %10 = vector.extract %9[0, 0, 0] : f32 from vector<1x1x1xf32>
    %cst_3 = arith.constant 3.840000e+03 : f32
    %11 = arith.mulf %cst_3, %5 : f32
    %12 = arith.mulf %11, %5 : f32
    %13 = arith.subf %10, %12 : f32
    %cst_4 = arith.constant 3.839000e+03 : f32
    %14 = arith.divf %13, %cst_4 : f32
    %cst_5 = arith.constant 0.000000e+00 : f32
    %15 = arith.maximumf %14, %cst_5 : f32
    %16 = vector.broadcast %5 : f32 to vector<16x240xf32>
    %17 = arith.subf %0, %16 : vector<16x240xf32>
    %18 = math.sqrt %15 : f32
    %cst_6 = arith.constant 1.000000e-03 : f32
    %19 = arith.addf %18, %cst_6 : f32
    %cst_7 = arith.constant 1.000000e+00 : f32
    %20 = arith.divf %cst_7, %19 : f32
    %21 = vector.broadcast %20 : f32 to vector<16x240xf32>
    %22 = arith.mulf %17, %21 : vector<16x240xf32>
    %c0_8 = arith.constant 0 : index
    %c0_9 = arith.constant 0 : index
    %23 = vector.load %arg1[%c0_8, %c0_9] : memref<4x16xf32, #tpu.memory_space<vmem>>, vector<4x16xf32>
    %cst_10 = arith.constant dense<0.000000e+00> : vector<4x240xf32>
    %24 = tpu.matmul %23, %22, %cst_10 {dimension_numbers = #tpu.dot_dimension_numbers<[1], [0], [0], [1], [0, 0, 1, 1], [], []>} : vector<4x16xf32>, vector<16x240xf32>, vector<4x240xf32> -> vector<4x240xf32>
    %c0_11 = arith.constant 0 : index
    %c0_12 = arith.constant 0 : index
    %25 = vector.load %arg2[%c0_11, %c0_12] : memref<4x1xf32, #tpu.memory_space<vmem>>, vector<4x1xf32>
    %26 = vector.broadcast %25 : vector<4x1xf32> to vector<4x240xf32>
    %27 = arith.addf %24, %26 : vector<4x240xf32>
    %c0_13 = arith.constant 0 : index
    %c0_14 = arith.constant 0 : index
    %28 = vector.load %arg3[%c0_13, %c0_14] : memref<240x1024xf32, #tpu.memory_space<vmem>>, vector<240x1024xf32>
    %cst_15 = arith.constant dense<0.000000e+00> : vector<4x1024xf32>
    %29 = tpu.matmul %27, %28, %cst_15 {dimension_numbers = #tpu.dot_dimension_numbers<[1], [0], [0], [1], [0, 0, 1, 1], [], []>} : vector<4x240xf32>, vector<240x1024xf32>, vector<4x1024xf32> -> vector<4x1024xf32>
    %c0_16 = arith.constant 0 : index
    %c0_17 = arith.constant 0 : index
    %30 = vector.load %arg4[%c0_16, %c0_17] : memref<1x1024xf32, #tpu.memory_space<vmem>>, vector<1x1024xf32>
    %31 = vector.broadcast %30 : vector<1x1024xf32> to vector<4x1024xf32>
    %32 = arith.addf %29, %31 : vector<4x1024xf32>
    %c0_18 = arith.constant 0 : index
    %c0_19 = arith.constant 0 : index
    %33 = vector.load %arg17[%c0_18, %c0_19] : memref<4x1024xf32, #tpu.memory_space<vmem>>, vector<4x1024xf32>
    tpu.vector_store %arg17[%c0_18, %c0_19], %32 {strides = array<i32>} : memref<4x1024xf32, #tpu.memory_space<vmem>>, vector<4x1024xf32>,
    %cst_20 = arith.constant 0.000000e+00 : f32
    %34 = vector.broadcast %cst_20 : f32 to vector<4x1024xf32>
    %35 = arith.cmpf ogt, %32, %34 : vector<4x1024xf32>
    %cst_21 = arith.constant 0.000000e+00 : f32
    %36 = vector.broadcast %cst_21 : f32 to vector<4x1024xf32>
    %37 = arith.minimumf %32, %36 : vector<4x1024xf32>
    %38 = math.exp %37 : vector<4x1024xf32>
    %cst_22 = arith.constant 1.000000e+00 : f32
    %39 = vector.broadcast %cst_22 : f32 to vector<4x1024xf32>
    %40 = arith.subf %38, %39 : vector<4x1024xf32>
    %41 = arith.select %35, %32, %40 : vector<4x1024xi1>, vector<4x1024xf32>
    %c0_23 = arith.constant 0 : index
    %c0_24 = arith.constant 0 : index
    %42 = vector.load %arg5[%c0_23, %c0_24] : memref<1024x40xf32, #tpu.memory_space<vmem>>, vector<1024x40xf32>
    %cst_25 = arith.constant dense<0.000000e+00> : vector<4x40xf32>
    %43 = tpu.matmul %41, %42, %cst_25 {dimension_numbers = #tpu.dot_dimension_numbers<[1], [0], [0], [1], [0, 0, 1, 1], [], []>} : vector<4x1024xf32>, vector<1024x40xf32>, vector<4x40xf32> -> vector<4x40xf32>
    %c0_26 = arith.constant 0 : index
    %c0_27 = arith.constant 0 : index
    %44 = vector.load %arg6[%c0_26, %c0_27] : memref<40x40xf32, #tpu.memory_space<vmem>>, vector<40x40xf32>
    %cst_28 = arith.constant dense<0.000000e+00> : vector<4x40xf32>
    %45 = tpu.matmul %43, %44, %cst_28 {dimension_numbers = #tpu.dot_dimension_numbers<[1], [0], [0], [1], [0, 0, 1, 1], [], []>} : vector<4x40xf32>, vector<40x40xf32>, vector<4x40xf32> -> vector<4x40xf32>
    %cst_29 = arith.constant dense<0.000000e+00> : vector<40xf32>
    %46 = vector.multi_reduction <add>, %45, %cst_29 [0] : vector<4x40xf32> to vector<40xf32>
    %47 = vector.shape_cast %46 : vector<40xf32> to vector<1x40xf32>
    %48 = arith.mulf %43, %43 : vector<4x40xf32>
    %c0_30 = arith.constant 0 : index
    %c0_31 = arith.constant 0 : index
    %49 = vector.load %arg6[%c0_30, %c0_31] : memref<40x40xf32, #tpu.memory_space<vmem>>, vector<40x40xf32>
    %cst_32 = arith.constant dense<0.000000e+00> : vector<4x40xf32>
    %50 = tpu.matmul %48, %49, %cst_32 {dimension_numbers = #tpu.dot_dimension_numbers<[1], [0], [0], [1], [0, 0, 1, 1], [], []>} : vector<4x40xf32>, vector<40x40xf32>, vector<4x40xf32> -> vector<4x40xf32>
    %cst_33 = arith.constant dense<0.000000e+00> : vector<40xf32>
    %51 = vector.multi_reduction <add>, %50, %cst_33 [0] : vector<4x40xf32> to vector<40xf32>
    %52 = vector.shape_cast %51 : vector<40xf32> to vector<1x40xf32>
    %53 = arith.mulf %47, %47 : vector<1x40xf32>
    %54 = arith.subf %52, %53 : vector<1x40xf32>
    %cst_34 = arith.constant 1.02564108 : f32
    %55 = vector.broadcast %cst_34 : f32 to vector<1x40xf32>
    %56 = arith.mulf %54, %55 : vector<1x40xf32>
    %cst_35 = arith.constant 0.000000e+00 : f32
    %57 = vector.broadcast %cst_35 : f32 to vector<1x40xf32>
    %58 = arith.maximumf %56, %57 : vector<1x40xf32>
    %59 = vector.broadcast %47 : vector<1x40xf32> to vector<4x40xf32>
    %60 = arith.subf %43, %59 : vector<4x40xf32>
    %61 = math.sqrt %58 : vector<1x40xf32>
    %cst_36 = arith.constant 1.000000e-03 : f32
    %62 = vector.broadcast %cst_36 : f32 to vector<1x40xf32>
    %63 = arith.addf %61, %62 : vector<1x40xf32>
    %cst_37 = arith.constant 1.000000e+00 : f32
    %64 = vector.broadcast %cst_37 : f32 to vector<1x40xf32>
    %65 = arith.divf %64, %63 : vector<1x40xf32>
    %66 = vector.broadcast %65 : vector<1x40xf32> to vector<4x40xf32>
    %67 = arith.mulf %60, %66 : vector<4x40xf32>
    %c0_38 = arith.constant 0 : index
    %c0_39 = arith.constant 0 : index
    %68 = vector.load %arg7[%c0_38, %c0_39] : memref<8x4xf32, #tpu.memory_space<vmem>>, vector<8x4xf32>
    %cst_40 = arith.constant dense<0.000000e+00> : vector<8x40xf32>
    %69 = tpu.matmul %68, %67, %cst_40 {dimension_numbers = #tpu.dot_dimension_numbers<[1], [0], [0], [1], [0, 0, 1, 1], [], []>} : vector<8x4xf32>, vector<4x40xf32>, vector<8x40xf32> -> vector<8x40xf32>
    %c0_41 = arith.constant 0 : index
    %c0_42 = arith.constant 0 : index
    %70 = vector.load %arg9[%c0_41, %c0_42] : memref<8x40xf32, #tpu.memory_space<vmem>>, vector<8x40xf32>
    %71 = arith.mulf %69, %70 : vector<8x40xf32>
    %c0_43 = arith.constant 0 : index
    %c0_44 = arith.constant 0 : index
    %72 = vector.load %arg10[%c0_43, %c0_44] : memref<40x10xf32, #tpu.memory_space<vmem>>, vector<40x10xf32>
    %cst_45 = arith.constant dense<0.000000e+00> : vector<8x10xf32>
    %73 = tpu.matmul %71, %72, %cst_45 {dimension_numbers = #tpu.dot_dimension_numbers<[1], [0], [0], [1], [0, 0, 1, 1], [], []>} : vector<8x40xf32>, vector<40x10xf32>, vector<8x10xf32> -> vector<8x10xf32>
    %c0_46 = arith.constant 0 : index
    %c0_47 = arith.constant 0 : index
    %74 = vector.load %arg8[%c0_46, %c0_47] : memref<8x1xf32, #tpu.memory_space<vmem>>, vector<8x1xf32>
    %75 = vector.broadcast %74 : vector<8x1xf32> to vector<8x10xf32>
    %76 = arith.addf %73, %75 : vector<8x10xf32>
    %cst_48 = arith.constant 0.000000e+00 : f32
    %77 = vector.broadcast %cst_48 : f32 to vector<8x10xf32>
    %78 = arith.cmpf ogt, %76, %77 : vector<8x10xf32>
    %cst_49 = arith.constant 0.000000e+00 : f32
    %79 = vector.broadcast %cst_49 : f32 to vector<8x10xf32>
    %80 = arith.minimumf %76, %79 : vector<8x10xf32>
    %81 = math.exp %80 : vector<8x10xf32>
    %cst_50 = arith.constant 1.000000e+00 : f32
    %82 = vector.broadcast %cst_50 : f32 to vector<8x10xf32>
    %83 = arith.subf %81, %82 : vector<8x10xf32>
    %84 = arith.select %78, %76, %83 : vector<8x10xi1>, vector<8x10xf32>
    %c0_51 = arith.constant 0 : index
    %c0_52 = arith.constant 0 : index
    %85 = vector.load %arg11[%c0_51, %c0_52] : memref<16x8xf32, #tpu.memory_space<vmem>>, vector<16x8xf32>
    %cst_53 = arith.constant dense<0.000000e+00> : vector<16x10xf32>
    %86 = tpu.matmul %85, %84, %cst_53 {dimension_numbers = #tpu.dot_dimension_numbers<[1], [0], [0], [1], [0, 0, 1, 1], [], []>} : vector<16x8xf32>, vector<8x10xf32>, vector<16x10xf32> -> vector<16x10xf32>
    %c0_54 = arith.constant 0 : index
    %c0_55 = arith.constant 0 : index
    %87 = vector.load %arg12[%c0_54, %c0_55] : memref<10x16xf32, #tpu.memory_space<vmem>>, vector<10x16xf32>
    %cst_56 = arith.constant dense<0.000000e+00> : vector<16x16xf32>
    %88 = tpu.matmul %86, %87, %cst_56 {dimension_numbers = #tpu.dot_dimension_numbers<[1], [0], [0], [1], [0, 0, 1, 1], [], []>} : vector<16x10xf32>, vector<10x16xf32>, vector<16x16xf32> -> vector<16x16xf32>
    %c0_57 = arith.constant 0 : index
    %c0_58 = arith.constant 0 : index
    %89 = vector.load %arg13[%c0_57, %c0_58] : memref<16x16xf32, #tpu.memory_space<vmem>>, vector<16x16xf32>
    %90 = arith.mulf %88, %89 : vector<16x16xf32>
    %c0_59 = arith.constant 0 : index
    %c0_60 = arith.constant 0 : index
    %91 = vector.load %arg14[%c0_59, %c0_60] : memref<16x4xf32, #tpu.memory_space<vmem>>, vector<16x4xf32>
    %cst_61 = arith.constant dense<0.000000e+00> : vector<16x4xf32>
    %92 = tpu.matmul %90, %91, %cst_61 {dimension_numbers = #tpu.dot_dimension_numbers<[1], [0], [0], [1], [0, 0, 1, 1], [], []>} : vector<16x16xf32>, vector<16x4xf32>, vector<16x4xf32> -> vector<16x4xf32>
    %c0_62 = arith.constant 0 : index
    %c0_63 = arith.constant 0 : index
    %93 = vector.load %arg15[%c0_62, %c0_63] : memref<16x1xf32, #tpu.memory_space<vmem>>, vector<16x1xf32>
    %94 = vector.broadcast %93 : vector<16x1xf32> to vector<16x4xf32>
    %95 = arith.addf %92, %94 : vector<16x4xf32>
    %cst_64 = arith.constant 0.000000e+00 : f32
    %96 = vector.broadcast %cst_64 : f32 to vector<16x4xf32>
    %97 = arith.cmpf ogt, %95, %96 : vector<16x4xf32>
    %cst_65 = arith.constant 0.000000e+00 : f32
    %98 = vector.broadcast %cst_65 : f32 to vector<16x4xf32>
    %99 = arith.minimumf %95, %98 : vector<16x4xf32>
    %100 = math.exp %99 : vector<16x4xf32>
    %cst_66 = arith.constant 1.000000e+00 : f32
    %101 = vector.broadcast %cst_66 : f32 to vector<16x4xf32>
    %102 = arith.subf %100, %101 : vector<16x4xf32>
    %103 = arith.select %97, %95, %102 : vector<16x4xi1>, vector<16x4xf32>
    %c0_67 = arith.constant 0 : index
    %c0_68 = arith.constant 0 : index
    %104 = vector.load %arg16[%c0_67, %c0_68] : memref<16x4xf32, #tpu.memory_space<vmem>>, vector<16x4xf32>
    tpu.vector_store %arg16[%c0_67, %c0_68], %103 {strides = array<i32>} : memref<16x4xf32, #tpu.memory_space<vmem>>, vector<16x4xf32>,
    return
  }
}

</mosaic_0001>

<llo_original>
// kernel: tpu_custom_call.1
$region0: #{tpu_custom_call.1}
  #allocation0 [shape = 'u32[]', space=smem, size = 0x4, offset = 0x4, fixed_abs, tag = 'smem constant byte address 0x4 - core index']
  #allocation1 [shape = 'u32[72,128]{1,0:T(1,128)}', space=vmem, size = 0x9000, scoped, tag = 'internal scratch']
  %s0 = inlined_call_operand.vmem [shape: f32[16,240], index: 0, kind: input, shape index: {}]
  %s1 = inlined_call_operand.vmem [shape: f32[4,16], index: 1, kind: input, shape index: {}]
  %s2 = inlined_call_operand.vmem [shape: f32[4,1], index: 2, kind: input, shape index: {}]
  %s3 = inlined_call_operand.hbm [shape: f32[240,1024], index: 3, kind: input, shape index: {}]
  %s4 = inlined_call_operand.vmem [shape: f32[1,1024], index: 4, kind: input, shape index: {}]
  %s5 = inlined_call_operand.vmem [shape: f32[1024,40], index: 5, kind: input, shape index: {}]
  %s6 = inlined_call_operand.vmem [shape: f32[40,40], index: 6, kind: input, shape index: {}]
  %s7 = inlined_call_operand.vmem [shape: f32[8,4], index: 7, kind: input, shape index: {}]
  %s8 = inlined_call_operand.vmem [shape: f32[8,1], index: 8, kind: input, shape index: {}]
  %s9 = inlined_call_operand.vmem [shape: f32[8,40], index: 9, kind: input, shape index: {}]
  %s10 = inlined_call_operand.vmem [shape: f32[40,10], index: 10, kind: input, shape index: {}]
  %s11 = inlined_call_operand.vmem [shape: f32[16,8], index: 11, kind: input, shape index: {}]
  %s12 = inlined_call_operand.vmem [shape: f32[10,16], index: 12, kind: input, shape index: {}]
  %s13 = inlined_call_operand.vmem [shape: f32[16,16], index: 13, kind: input, shape index: {}]
  %s14 = inlined_call_operand.vmem [shape: f32[16,4], index: 14, kind: input, shape index: {}]
  %s15 = inlined_call_operand.vmem [shape: f32[16,1], index: 15, kind: input, shape index: {}]
  %s16 = inlined_call_operand.vmem [shape: f32[16,4], index: 16, kind: output, shape index: {0}]
  %s17 = inlined_call_operand.hbm [shape: f32[4,1024], index: 17, kind: output, shape index: {1}]
  %18 = xla_tuple %s16, %s17
  %s19 = sld [smem:[#allocation0]]
  $region86: #{tpu_custom_call.1} parent=0
    _
  %s21 = ssub.s32 1, %s19
  %s22 = scalar_select 0, %s21, %s19
  $region1: #{tpu_custom_call.1} parent=0
    #allocation2 [shape = 'u8[983040]{0}', space=vmem, size = 0xf0000, scoped, tag = 'input window, operand 3, single buffered']
    #allocation3 [shape = 's32[1]{0}', space=sflag, size = 0x4, scoped, tag = 'scoped memory for tpu_custom_call.1']
    #allocation4 [shape = 's32[1]{0}', space=sflag, size = 0x4, scoped, tag = 'scoped memory for tpu_custom_call.1']
    #allocation5 [shape = 'u8[16384]{0}', space=vmem, size = 0x4000, scoped, tag = 'output window, operand 1, single buffered']
    %23 = vsyncpa [#allocation3], 0
    %24 = vsyncpa [#allocation4], 0
    // Predicated region
    $region2: #{tpu_custom_call.1} parent=1 // pred_check
      _
    $region3: #{tpu_custom_call.1} parent=1 // pred_check_branch
      %26 = sbr.rel (0) target = $region5
    $region4: #{tpu_custom_call.1} parent=1 // pred_region
      _
    $region5: #{tpu_custom_call.1} parent=1 // pred_fallthru
      _
    // Predicated region
    $region6: #{tpu_custom_call.1} parent=1 // pred_check
      _
    $region7: #{tpu_custom_call.1} parent=1 // pred_check_branch
      %28 = sbr.rel (0) target = $region9
    $region8: #{tpu_custom_call.1} parent=1 // pred_region
      _
    $region9: #{tpu_custom_call.1} parent=1 // pred_fallthru
      _
    // Predicated region
    $region10: #{tpu_custom_call.1} parent=1 // pred_check
      _
    $region11: #{tpu_custom_call.1} parent=1 // pred_check_branch
      %30 = sbr.rel (0) target = $region13
    $region12: #{tpu_custom_call.1} parent=1 // pred_region
      _
    $region13: #{tpu_custom_call.1} parent=1 // pred_fallthru
      _
    // Predicated region
    $region14: #{tpu_custom_call.1} parent=1 // pred_check
      _
    $region15: #{tpu_custom_call.1} parent=1 // pred_check_branch
      %32 = sbr.rel (0) target = $region17
    $region16: #{tpu_custom_call.1} parent=1 // pred_region
      %34 = vsyncadd [#allocation3], 0
      %s35 = sshll.u32 %s3, 4
      %s36 = int_to_ptr.hbm [resolvable:$true] %s35
      %s37 = sshll.u32 [#allocation2], 4
      %s38 = int_to_ptr.vmem [resolvable:$true] %s37
      %43 = dma.hbm_to_vmem [thread:$0]  %s36, 30720, %s38, [#allocation3], 1024, 1024, 64
    $region17: #{tpu_custom_call.1} parent=1 // pred_fallthru
      _
    // Predicated region
    $region18: #{tpu_custom_call.1} parent=1 // pred_check
      _
    $region19: #{tpu_custom_call.1} parent=1 // pred_check_branch
      %45 = sbr.rel (0) target = $region21
    $region20: #{tpu_custom_call.1} parent=1 // pred_region
      _
    $region21: #{tpu_custom_call.1} parent=1 // pred_fallthru
      _
    // Predicated region
    $region22: #{tpu_custom_call.1} parent=1 // pred_check
      _
    $region23: #{tpu_custom_call.1} parent=1 // pred_check_branch
      %47 = sbr.rel (0) target = $region25
    $region24: #{tpu_custom_call.1} parent=1 // pred_region
      _
    $region25: #{tpu_custom_call.1} parent=1 // pred_fallthru
      _
    // Predicated region
    $region26: #{tpu_custom_call.1} parent=1 // pred_check
      _
    $region27: #{tpu_custom_call.1} parent=1 // pred_check_branch
      %49 = sbr.rel (0) target = $region29
    $region28: #{tpu_custom_call.1} parent=1 // pred_region
      _
    $region29: #{tpu_custom_call.1} parent=1 // pred_fallthru
      _
    // Predicated region
    $region30: #{tpu_custom_call.1} parent=1 // pred_check
      _
    $region31: #{tpu_custom_call.1} parent=1 // pred_check_branch
      %51 = sbr.rel (0) target = $region33
    $region32: #{tpu_custom_call.1} parent=1 // pred_region
      _
    $region33: #{tpu_custom_call.1} parent=1 // pred_fallthru
      _
    // Predicated region
    $region34: #{tpu_custom_call.1} parent=1 // pred_check
      _
    $region35: #{tpu_custom_call.1} parent=1 // pred_check_branch
      %53 = sbr.rel (0) target = $region37
    $region36: #{tpu_custom_call.1} parent=1 // pred_region
      _
    $region37: #{tpu_custom_call.1} parent=1 // pred_fallthru
      _
    // Predicated region
    $region38: #{tpu_custom_call.1} parent=1 // pred_check
      _
    $region39: #{tpu_custom_call.1} parent=1 // pred_check_branch
      %55 = sbr.rel (0) target = $region41
    $region40: #{tpu_custom_call.1} parent=1 // pred_region
      _
    $region41: #{tpu_custom_call.1} parent=1 // pred_fallthru
      _
    // Predicated region
    $region42: #{tpu_custom_call.1} parent=1 // pred_check
      _
    $region43: #{tpu_custom_call.1} parent=1 // pred_check_branch
      %57 = sbr.rel (0) target = $region45
    $region44: #{tpu_custom_call.1} parent=1 // pred_region
      _
    $region45: #{tpu_custom_call.1} parent=1 // pred_fallthru
      _
    // Predicated region
    $region46: #{tpu_custom_call.1} parent=1 // pred_check
      _
    $region47: #{tpu_custom_call.1} parent=1 // pred_check_branch
      %59 = sbr.rel (0) target = $region49
    $region48: #{tpu_custom_call.1} parent=1 // pred_region
      _
    $region49: #{tpu_custom_call.1} parent=1 // pred_fallthru
      _
    // Predicated region
    $region50: #{tpu_custom_call.1} parent=1 // pred_check
      _
    $region51: #{tpu_custom_call.1} parent=1 // pred_check_branch
      %61 = sbr.rel (0) target = $region53
    $region52: #{tpu_custom_call.1} parent=1 // pred_region
      _
    $region53: #{tpu_custom_call.1} parent=1 // pred_fallthru
      _
    // Predicated region
    $region54: #{tpu_custom_call.1} parent=1 // pred_check
      _
    $region55: #{tpu_custom_call.1} parent=1 // pred_check_branch
      %63 = sbr.rel (0) target = $region57
    $region56: #{tpu_custom_call.1} parent=1 // pred_region
      _
    $region57: #{tpu_custom_call.1} parent=1 // pred_fallthru
      _
    // Predicated region
    $region58: #{tpu_custom_call.1} parent=1 // pred_check
      _
    $region59: #{tpu_custom_call.1} parent=1 // pred_check_branch
      %65 = sbr.rel (0) target = $region61
    $region60: #{tpu_custom_call.1} parent=1 // pred_region
      _
    $region61: #{tpu_custom_call.1} parent=1 // pred_fallthru
      _
    // Predicated region
    $region62: #{tpu_custom_call.1} parent=1 // pred_check
      _
    $region63: #{tpu_custom_call.1} parent=1 // pred_check_branch
      %67 = sbr.rel (0) target = $region65
    $region64: #{tpu_custom_call.1} parent=1 // pred_region
      _
    $region65: #{tpu_custom_call.1} parent=1 // pred_fallthru
      _
    // Predicated region
    $region66: #{tpu_custom_call.1} parent=1 // pred_check
      _
    $region67: #{tpu_custom_call.1} parent=1 // pred_check_branch
      %69 = sbr.rel (0) target = $region69
    $region68: #{tpu_custom_call.1} parent=1 // pred_region
      %71 = dma.done [#allocation3], 30720
    $region69: #{tpu_custom_call.1} parent=1 // pred_fallthru
      _
    %v72 = vld [vmem:[%s0] sm:$0xff]
    %v73 = vld [vmem:[%s0 + $0x8] sm:$0xff]
    %v74 = vld [vmem:[%s0 + $0x10] sm:$0xff]
    %v75 = vld [vmem:[%s0 + $0x18] sm:$0xff]
    %vm76 = vcmask 916480
    %v77 = vsel %vm76, %v73, 0.0
    %v78 = vadd.f32 %v72, %v77
    %v79 = vadd.f32 %v78, %v74
    %v80 = vsel %vm76, %v75, 0.0
    %v81 = vadd.f32 %v79, %v80
    %82 = vadd.xlane.f32.xlu0 %v81
    %v83 = vpop.xlane.xlu0 %82
    %v84 = vrot.slane %v83, 4
    %v85 = vadd.f32 %v83, %v84
    %v86 = vrot.slane %v85, 2
    %v87 = vadd.f32 %v85, %v86
    %v88 = vrot.slane %v87, 1
    %v89 = vadd.f32 %v87, %v88
    %s90 = vtos %v89
    %v91 = vrcp.pop 3840.0
    %v92 = vmul.f32 3840.0, %v91
    %v93 = vsub.f32 1.0, %v92
    %v94 = vmul.f32 %v91, %v93
    %v95 = vadd.f32 %v91, %v94
    %vm96 = vweird.f32 %v91
    %v97 = vsel %vm96, %v91, %v95
    %s98 = vtos %v97
    %s99 = smul.f32 %s90, %s98
    %v100 = vmul.f32 %v72, %v72
    %v101 = vmul.f32 %v73, %v73
    %v102 = vmul.f32 %v74, %v74
    %v103 = vmul.f32 %v75, %v75
    %v104 = vsel %vm76, %v101, 0.0
    %v105 = vadd.f32 %v100, %v104
    %v106 = vadd.f32 %v105, %v102
    %v107 = vsel %vm76, %v103, 0.0
    %v108 = vadd.f32 %v106, %v107
    %109 = vadd.xlane.f32.xlu0 %v108
    %v110 = vpop.xlane.xlu0 %109
    %v111 = vrot.slane %v110, 4
    %v112 = vadd.f32 %v110, %v111
    %v113 = vrot.slane %v112, 2
    %v114 = vadd.f32 %v112, %v113
    %v115 = vrot.slane %v114, 1
    %v116 = vadd.f32 %v114, %v115
    %s117 = vtos %v116
    %s118 = smul.f32 %s99, 3840.0
    %s119 = smul.f32 %s118, %s99
    %s120 = ssub.f32 %s117, %s119
    %v121 = vrcp.pop 3839.0
    %v122 = vmul.f32 3839.0, %v121
    %v123 = vsub.f32 1.0, %v122
    %v124 = vmul.f32 %v121, %v123
    %v125 = vadd.f32 %v121, %v124
    %vm126 = vweird.f32 %v121
    %v127 = vsel %vm126, %v121, %v125
    %s128 = vtos %v127
    %s129 = smul.f32 %s120, %s128
    %s130 = smax.f32 %s129, 0.0
    %v131 = vstv %s99
    %v132 = vsub.f32 %v72, %v131
    %v133 = vsub.f32 %v73, %v131
    %v134 = vsub.f32 %v74, %v131
    %v135 = vsub.f32 %v75, %v131
    %v136 = vstv %s130
    %v137 = vrsqrt.pop %v136
    %v138 = vmul.f32 %v137, %v136
    %v139 = vmul.f32 %v138, %v137
    %v140 = vmul.f32 0.5, %v139
    %v141 = vsub.f32 1.5, %v140
    %v142 = vmul.f32 %v137, %v141
    %v143 = vmul.f32 %v136, %v142
    %vm144 = vcmp.eq.f32.partialorder %v136, inf
    %v145 = vsel %vm144, %v136, %v143
    %vm146 = vcmp.eq.f32.partialorder %v136, 0.0
    %v147 = vand.u32 %v136, 2147483648
    %v148 = vsel %vm146, %v147, %v145
    %s149 = vtos %v148
    %s150 = sadd.f32 %s149, 0.001
    %v151 = vstv %s150
    %v152 = vrcp.pop %v151
    %v153 = vmul.f32 %v151, %v152
    %v154 = vsub.f32 1.0, %v153
    %v155 = vmul.f32 %v152, %v154
    %v156 = vadd.f32 %v152, %v155
    %vm157 = vweird.f32 %v151
    %vm158 = vweird.f32 %v152
    %vm159 = vmor %vm157, %vm158
    %v160 = vsel %vm159, %v152, %v156
    %v161 = vand.u32 2147483647, %v151
    %vm162 = vcmp.eq.f32.partialorder %v161, 8.507059e+37
    %v163 = vand.u32 %v151, 2147483648
    %v164 = vor.u32 1.1754944e-38, %v163
    %v165 = vsel %vm162, %v164, %v160
    %s166 = vtos %v165
    %v167 = vstv %s166
    %v168 = vmul.f32 %v132, %v167
    %v169 = vmul.f32 %v133, %v167
    %v170 = vmul.f32 %v134, %v167
    %v171 = vmul.f32 %v135, %v167
    %v172 = vld [vmem:[%s1] sm:$0xf]
    %v173 = vld [vmem:[%s2] sm:$0xf]
    %175 = vset.pattern.permute.xlu0 0
    %176 = vperm.xlu0 %175, %v173
    %v177 = vpop.permute.xlu0 %176
    %vm179 = vcmask 130048
    %v181 = vsel %vm179, %v172, 0
    %183 = vmatpush.msra.mxu0 0.0
    %184 = vmatpush.msra.mxu0 0.0
    %185 = vmatpush.msra.mxu0 0.0
    %186 = vmatpush.msra.mxu0 0.0
    %187 = vmatpush.msra.mxu0 0.0
    %188 = vmatpush.msra.mxu0 0.0
    %189 = vmatpush.msra.mxu0 0.0
    %190 = vmatpush.msra.mxu0 0.0
    %191 = vmatpush.msra.mxu0 0.0
    %192 = vmatpush.msra.mxu0 0.0
    %193 = vmatpush.msra.mxu0 0.0
    %194 = vmatpush.msra.mxu0 0.0
    %195 = vmatpush.msra.mxu0 0.0
    %196 = vmatpush.msra.mxu0 0.0
    %197 = vmatpush.msra.mxu0 %v170
    %198 = vmatpush.msra.mxu0 %v168
    %199 = vmatmul.f32.gmra.mxu0 %v181
    %v200 = vpop.f32.mrf.mxu0
    %v201 = vadd.f32 %v177, %v200
    %202 = vdwg.mxu0
    %203 = vmatpush.msra.mxu0 0.0
    %204 = vmatpush.msra.mxu0 0.0
    %205 = vmatpush.msra.mxu0 0.0
    %206 = vmatpush.msra.mxu0 0.0
    %207 = vmatpush.msra.mxu0 0.0
    %208 = vmatpush.msra.mxu0 0.0
    %209 = vmatpush.msra.mxu0 0.0
    %210 = vmatpush.msra.mxu0 0.0
    %211 = vmatpush.msra.mxu0 0.0
    %212 = vmatpush.msra.mxu0 0.0
    %213 = vmatpush.msra.mxu0 0.0
    %214 = vmatpush.msra.mxu0 0.0
    %215 = vmatpush.msra.mxu0 0.0
    %216 = vmatpush.msra.mxu0 0.0
    %217 = vmatpush.msra.mxu0 %v171
    %218 = vmatpush.msra.mxu0 %v169
    %219 = vmatmul.f32.gmra.mxu0 %v181
    %v220 = vpop.f32.mrf.mxu0
    %v221 = vadd.f32 %v177, %v220
    %222 = vdwg.mxu0
    %v223 = vld [vmem:[#allocation2] sm:$0xff]
    %v224 = vld [vmem:[#allocation2 + $0x8] sm:$0xff]
    %v225 = vld [vmem:[#allocation2 + $0x10] sm:$0xff]
    %v226 = vld [vmem:[#allocation2 + $0x18] sm:$0xff]
    %v227 = vld [vmem:[#allocation2 + $0x20] sm:$0xff]
    %v228 = vld [vmem:[#allocation2 + $0x28] sm:$0xff]
    %v229 = vld [vmem:[#allocation2 + $0x30] sm:$0xff]
    %v230 = vld [vmem:[#allocation2 + $0x38] sm:$0xff]
    %v231 = vld [vmem:[#allocation2 + $0x40] sm:$0xff]
    %v232 = vld [vmem:[#allocation2 + $0x48] sm:$0xff]
    %v233 = vld [vmem:[#allocation2 + $0x50] sm:$0xff]
    %v234 = vld [vmem:[#allocation2 + $0x58] sm:$0xff]
    %v235 = vld [vmem:[#allocation2 + $0x60] sm:$0xff]
    %v236 = vld [vmem:[#allocation2 + $0x68] sm:$0xff]
    %v237 = vld [vmem:[#allocation2 + $0x70] sm:$0xff]
    %v238 = vld [vmem:[#allocation2 + $0x78] sm:$0xff]
    %v239 = vld [vmem:[#allocation2 + $0x80] sm:$0xff]
    %v240 = vld [vmem:[#allocation2 + $0x88] sm:$0xff]
    %v241 = vld [vmem:[#allocation2 + $0x90] sm:$0xff]
    %v242 = vld [vmem:[#allocation2 + $0x98] sm:$0xff]
    %v243 = vld [vmem:[#allocation2 + $0xa0] sm:$0xff]
    %v244 = vld [vmem:[#allocation2 + $0xa8] sm:$0xff]
    %v245 = vld [vmem:[#allocation2 + $0xb0] sm:$0xff]
    %v246 = vld [vmem:[#allocation2 + $0xb8] sm:$0xff]
    %v247 = vld [vmem:[#allocation2 + $0xc0] sm:$0xff]
    %v248 = vld [vmem:[#allocation2 + $0xc8] sm:$0xff]
    %v249 = vld [vmem:[#allocation2 + $0xd0] sm:$0xff]
    %v250 = vld [vmem:[#allocation2 + $0xd8] sm:$0xff]
    %v251 = vld [vmem:[#allocation2 + $0xe0] sm:$0xff]
    %v252 = vld [vmem:[#allocation2 + $0xe8] sm:$0xff]
    %v253 = vld [vmem:[#allocation2 + $0xf0] sm:$0xff]
    %v254 = vld [vmem:[#allocation2 + $0xf8] sm:$0xff]
    %v255 = vld [vmem:[#allocation2 + $0x100] sm:$0xff]
    %v256 = vld [vmem:[#allocation2 + $0x108] sm:$0xff]
    %v257 = vld [vmem:[#allocation2 + $0x110] sm:$0xff]
    %v258 = vld [vmem:[#allocation2 + $0x118] sm:$0xff]
    %v259 = vld [vmem:[#allocation2 + $0x120] sm:$0xff]
    %v260 = vld [vmem:[#allocation2 + $0x128] sm:$0xff]
    %v261 = vld [vmem:[#allocation2 + $0x130] sm:$0xff]
    %v262 = vld [vmem:[#allocation2 + $0x138] sm:$0xff]
    %v263 = vld [vmem:[#allocation2 + $0x140] sm:$0xff]
    %v264 = vld [vmem:[#allocation2 + $0x148] sm:$0xff]
    %v265 = vld [vmem:[#allocation2 + $0x150] sm:$0xff]
    %v266 = vld [vmem:[#allocation2 + $0x158] sm:$0xff]
    %v267 = vld [vmem:[#allocation2 + $0x160] sm:$0xff]
    %v268 = vld [vmem:[#allocation2 + $0x168] sm:$0xff]
    %v269 = vld [vmem:[#allocation2 + $0x170] sm:$0xff]
    %v270 = vld [vmem:[#allocation2 + $0x178] sm:$0xff]
    %v271 = vld [vmem:[#allocation2 + $0x180] sm:$0xff]
    %v272 = vld [vmem:[#allocation2 + $0x188] sm:$0xff]
    %v273 = vld [vmem:[#allocation2 + $0x190] sm:$0xff]
    %v274 = vld [vmem:[#allocation2 + $0x198] sm:$0xff]
    %v275 = vld [vmem:[#allocation2 + $0x1a0] sm:$0xff]
    %v276 = vld [vmem:[#allocation2 + $0x1a8] sm:$0xff]
    %v277 = vld [vmem:[#allocation2 + $0x1b0] sm:$0xff]
    %v278 = vld [vmem:[#allocation2 + $0x1b8] sm:$0xff]
    %v279 = vld [vmem:[#allocation2 + $0x1c0] sm:$0xff]
    %v280 = vld [vmem:[#allocation2 + $0x1c8] sm:$0xff]
    %v281 = vld [vmem:[#allocation2 + $0x1d0] sm:$0xff]
    %v282 = vld [vmem:[#allocation2 + $0x1d8] sm:$0xff]
    %v283 = vld [vmem:[#allocation2 + $0x1e0] sm:$0xff]
    %v284 = vld [vmem:[#allocation2 + $0x1e8] sm:$0xff]
    %v285 = vld [vmem:[#allocation2 + $0x1f0] sm:$0xff]
    %v286 = vld [vmem:[#allocation2 + $0x1f8] sm:$0xff]
    %v287 = vld [vmem:[#allocation2 + $0x200] sm:$0xff]
    %v288 = vld [vmem:[#allocation2 + $0x208] sm:$0xff]
    %v289 = vld [vmem:[#allocation2 + $0x210] sm:$0xff]
    %v290 = vld [vmem:[#allocation2 + $0x218] sm:$0xff]
    %v291 = vld [vmem:[#allocation2 + $0x220] sm:$0xff]
    %v292 = vld [vmem:[#allocation2 + $0x228] sm:$0xff]
    %v293 = vld [vmem:[#allocation2 + $0x230] sm:$0xff]
    %v294 = vld [vmem:[#allocation2 + $0x238] sm:$0xff]
    %v295 = vld [vmem:[#allocation2 + $0x240] sm:$0xff]
    %v296 = vld [vmem:[#allocation2 + $0x248] sm:$0xff]
    %v297 = vld [vmem:[#allocation2 + $0x250] sm:$0xff]
    %v298 = vld [vmem:[#allocation2 + $0x258] sm:$0xff]
    %v299 = vld [vmem:[#allocation2 + $0x260] sm:$0xff]
    %v300 = vld [vmem:[#allocation2 + $0x268] sm:$0xff]
    %v301 = vld [vmem:[#allocation2 + $0x270] sm:$0xff]
    %v302 = vld [vmem:[#allocation2 + $0x278] sm:$0xff]
    %v303 = vld [vmem:[#allocation2 + $0x280] sm:$0xff]
    %v304 = vld [vmem:[#allocation2 + $0x288] sm:$0xff]
    %v305 = vld [vmem:[#allocation2 + $0x290] sm:$0xff]
    %v306 = vld [vmem:[#allocation2 + $0x298] sm:$0xff]
    %v307 = vld [vmem:[#allocation2 + $0x2a0] sm:$0xff]
    %v308 = vld [vmem:[#allocation2 + $0x2a8] sm:$0xff]
    %v309 = vld [vmem:[#allocation2 + $0x2b0] sm:$0xff]
    %v310 = vld [vmem:[#allocation2 + $0x2b8] sm:$0xff]
    %v311 = vld [vmem:[#allocation2 + $0x2c0] sm:$0xff]
    %v312 = vld [vmem:[#allocation2 + $0x2c8] sm:$0xff]
    %v313 = vld [vmem:[#allocation2 + $0x2d0] sm:$0xff]
    %v314 = vld [vmem:[#allocation2 + $0x2d8] sm:$0xff]
    %v315 = vld [vmem:[#allocation2 + $0x2e0] sm:$0xff]
    %v316 = vld [vmem:[#allocation2 + $0x2e8] sm:$0xff]
    %v317 = vld [vmem:[#allocation2 + $0x2f0] sm:$0xff]
    %v318 = vld [vmem:[#allocation2 + $0x2f8] sm:$0xff]
    %v319 = vld [vmem:[#allocation2 + $0x300] sm:$0xff]
    %v320 = vld [vmem:[#allocation2 + $0x308] sm:$0xff]
    %v321 = vld [vmem:[#allocation2 + $0x310] sm:$0xff]
    %v322 = vld [vmem:[#allocation2 + $0x318] sm:$0xff]
    %v323 = vld [vmem:[#allocation2 + $0x320] sm:$0xff]
    %v324 = vld [vmem:[#allocation2 + $0x328] sm:$0xff]
    %v325 = vld [vmem:[#allocation2 + $0x330] sm:$0xff]
    %v326 = vld [vmem:[#allocation2 + $0x338] sm:$0xff]
    %v327 = vld [vmem:[#allocation2 + $0x340] sm:$0xff]
    %v328 = vld [vmem:[#allocation2 + $0x348] sm:$0xff]
    %v329 = vld [vmem:[#allocation2 + $0x350] sm:$0xff]
    %v330 = vld [vmem:[#allocation2 + $0x358] sm:$0xff]
    %v331 = vld [vmem:[#allocation2 + $0x360] sm:$0xff]
    %v332 = vld [vmem:[#allocation2 + $0x368] sm:$0xff]
    %v333 = vld [vmem:[#allocation2 + $0x370] sm:$0xff]
    %v334 = vld [vmem:[#allocation2 + $0x378] sm:$0xff]
    %v335 = vld [vmem:[#allocation2 + $0x380] sm:$0xff]
    %v336 = vld [vmem:[#allocation2 + $0x388] sm:$0xff]
    %v337 = vld [vmem:[#allocation2 + $0x390] sm:$0xff]
    %v338 = vld [vmem:[#allocation2 + $0x398] sm:$0xff]
    %v339 = vld [vmem:[#allocation2 + $0x3a0] sm:$0xff]
    %v340 = vld [vmem:[#allocation2 + $0x3a8] sm:$0xff]
    %v341 = vld [vmem:[#allocation2 + $0x3b0] sm:$0xff]
    %v342 = vld [vmem:[#allocation2 + $0x3b8] sm:$0xff]
    %v343 = vld [vmem:[#allocation2 + $0x3c0] sm:$0xff]
    %v344 = vld [vmem:[#allocation2 + $0x3c8] sm:$0xff]
    %v345 = vld [vmem:[#allocation2 + $0x3d0] sm:$0xff]
    %v346 = vld [vmem:[#allocation2 + $0x3d8] sm:$0xff]
    %v347 = vld [vmem:[#allocation2 + $0x3e0] sm:$0xff]
    %v348 = vld [vmem:[#allocation2 + $0x3e8] sm:$0xff]
    %v349 = vld [vmem:[#allocation2 + $0x3f0] sm:$0xff]
    %v350 = vld [vmem:[#allocation2 + $0x3f8] sm:$0xff]
    %v351 = vld [vmem:[#allocation2 + $0x400] sm:$0xff]
    %v352 = vld [vmem:[#allocation2 + $0x408] sm:$0xff]
    %v353 = vld [vmem:[#allocation2 + $0x410] sm:$0xff]
    %v354 = vld [vmem:[#allocation2 + $0x418] sm:$0xff]
    %v355 = vld [vmem:[#allocation2 + $0x420] sm:$0xff]
    %v356 = vld [vmem:[#allocation2 + $0x428] sm:$0xff]
    %v357 = vld [vmem:[#allocation2 + $0x430] sm:$0xff]
    %v358 = vld [vmem:[#allocation2 + $0x438] sm:$0xff]
    %v359 = vld [vmem:[#allocation2 + $0x440] sm:$0xff]
    %v360 = vld [vmem:[#allocation2 + $0x448] sm:$0xff]
    %v361 = vld [vmem:[#allocation2 + $0x450] sm:$0xff]
    %v362 = vld [vmem:[#allocation2 + $0x458] sm:$0xff]
    %v363 = vld [vmem:[#allocation2 + $0x460] sm:$0xff]
    %v364 = vld [vmem:[#allocation2 + $0x468] sm:$0xff]
    %v365 = vld [vmem:[#allocation2 + $0x470] sm:$0xff]
    %v366 = vld [vmem:[#allocation2 + $0x478] sm:$0xff]
    %v367 = vld [vmem:[#allocation2 + $0x480] sm:$0xff]
    %v368 = vld [vmem:[#allocation2 + $0x488] sm:$0xff]
    %v369 = vld [vmem:[#allocation2 + $0x490] sm:$0xff]
    %v370 = vld [vmem:[#allocation2 + $0x498] sm:$0xff]
    %v371 = vld [vmem:[#allocation2 + $0x4a0] sm:$0xff]
    %v372 = vld [vmem:[#allocation2 + $0x4a8] sm:$0xff]
    %v373 = vld [vmem:[#allocation2 + $0x4b0] sm:$0xff]
    %v374 = vld [vmem:[#allocation2 + $0x4b8] sm:$0xff]
    %v375 = vld [vmem:[#allocation2 + $0x4c0] sm:$0xff]
    %v376 = vld [vmem:[#allocation2 + $0x4c8] sm:$0xff]
    %v377 = vld [vmem:[#allocation2 + $0x4d0] sm:$0xff]
    %v378 = vld [vmem:[#allocation2 + $0x4d8] sm:$0xff]
    %v379 = vld [vmem:[#allocation2 + $0x4e0] sm:$0xff]
    %v380 = vld [vmem:[#allocation2 + $0x4e8] sm:$0xff]
    %v381 = vld [vmem:[#allocation2 + $0x4f0] sm:$0xff]
    %v382 = vld [vmem:[#allocation2 + $0x4f8] sm:$0xff]
    %v383 = vld [vmem:[#allocation2 + $0x500] sm:$0xff]
    %v384 = vld [vmem:[#allocation2 + $0x508] sm:$0xff]
    %v385 = vld [vmem:[#allocation2 + $0x510] sm:$0xff]
    %v386 = vld [vmem:[#allocation2 + $0x518] sm:$0xff]
    %v387 = vld [vmem:[#allocation2 + $0x520] sm:$0xff]
    %v388 = vld [vmem:[#allocation2 + $0x528] sm:$0xff]
    %v389 = vld [vmem:[#allocation2 + $0x530] sm:$0xff]
    %v390 = vld [vmem:[#allocation2 + $0x538] sm:$0xff]
    %v391 = vld [vmem:[#allocation2 + $0x540] sm:$0xff]
    %v392 = vld [vmem:[#allocation2 + $0x548] sm:$0xff]
    %v393 = vld [vmem:[#allocation2 + $0x550] sm:$0xff]
    %v394 = vld [vmem:[#allocation2 + $0x558] sm:$0xff]
    %v395 = vld [vmem:[#allocation2 + $0x560] sm:$0xff]
    %v396 = vld [vmem:[#allocation2 + $0x568] sm:$0xff]
    %v397 = vld [vmem:[#allocation2 + $0x570] sm:$0xff]
    %v398 = vld [vmem:[#allocation2 + $0x578] sm:$0xff]
    %v399 = vld [vmem:[#allocation2 + $0x580] sm:$0xff]
    %v400 = vld [vmem:[#allocation2 + $0x588] sm:$0xff]
    %v401 = vld [vmem:[#allocation2 + $0x590] sm:$0xff]
    %v402 = vld [vmem:[#allocation2 + $0x598] sm:$0xff]
    %v403 = vld [vmem:[#allocation2 + $0x5a0] sm:$0xff]
    %v404 = vld [vmem:[#allocation2 + $0x5a8] sm:$0xff]
    %v405 = vld [vmem:[#allocation2 + $0x5b0] sm:$0xff]
    %v406 = vld [vmem:[#allocation2 + $0x5b8] sm:$0xff]
    %v407 = vld [vmem:[#allocation2 + $0x5c0] sm:$0xff]
    %v408 = vld [vmem:[#allocation2 + $0x5c8] sm:$0xff]
    %v409 = vld [vmem:[#allocation2 + $0x5d0] sm:$0xff]
    %v410 = vld [vmem:[#allocation2 + $0x5d8] sm:$0xff]
    %v411 = vld [vmem:[#allocation2 + $0x5e0] sm:$0xff]
    %v412 = vld [vmem:[#allocation2 + $0x5e8] sm:$0xff]
    %v413 = vld [vmem:[#allocation2 + $0x5f0] sm:$0xff]
    %v414 = vld [vmem:[#allocation2 + $0x5f8] sm:$0xff]
    %v415 = vld [vmem:[#allocation2 + $0x600] sm:$0xff]
    %v416 = vld [vmem:[#allocation2 + $0x608] sm:$0xff]
    %v417 = vld [vmem:[#allocation2 + $0x610] sm:$0xff]
    %v418 = vld [vmem:[#allocation2 + $0x618] sm:$0xff]
    %v419 = vld [vmem:[#allocation2 + $0x620] sm:$0xff]
    %v420 = vld [vmem:[#allocation2 + $0x628] sm:$0xff]
    %v421 = vld [vmem:[#allocation2 + $0x630] sm:$0xff]
    %v422 = vld [vmem:[#allocation2 + $0x638] sm:$0xff]
    %v423 = vld [vmem:[#allocation2 + $0x640] sm:$0xff]
    %v424 = vld [vmem:[#allocation2 + $0x648] sm:$0xff]
    %v425 = vld [vmem:[#allocation2 + $0x650] sm:$0xff]
    %v426 = vld [vmem:[#allocation2 + $0x658] sm:$0xff]
    %v427 = vld [vmem:[#allocation2 + $0x660] sm:$0xff]
    %v428 = vld [vmem:[#allocation2 + $0x668] sm:$0xff]
    %v429 = vld [vmem:[#allocation2 + $0x670] sm:$0xff]
    %v430 = vld [vmem:[#allocation2 + $0x678] sm:$0xff]
    %v431 = vld [vmem:[#allocation2 + $0x680] sm:$0xff]
    %v432 = vld [vmem:[#allocation2 + $0x688] sm:$0xff]
    %v433 = vld [vmem:[#allocation2 + $0x690] sm:$0xff]
    %v434 = vld [vmem:[#allocation2 + $0x698] sm:$0xff]
    %v435 = vld [vmem:[#allocation2 + $0x6a0] sm:$0xff]
    %v436 = vld [vmem:[#allocation2 + $0x6a8] sm:$0xff]
    %v437 = vld [vmem:[#allocation2 + $0x6b0] sm:$0xff]
    %v438 = vld [vmem:[#allocation2 + $0x6b8] sm:$0xff]
    %v439 = vld [vmem:[#allocation2 + $0x6c0] sm:$0xff]
    %v440 = vld [vmem:[#allocation2 + $0x6c8] sm:$0xff]
    %v441 = vld [vmem:[#allocation2 + $0x6d0] sm:$0xff]
    %v442 = vld [vmem:[#allocation2 + $0x6d8] sm:$0xff]
    %v443 = vld [vmem:[#allocation2 + $0x6e0] sm:$0xff]
    %v444 = vld [vmem:[#allocation2 + $0x6e8] sm:$0xff]
    %v445 = vld [vmem:[#allocation2 + $0x6f0] sm:$0xff]
    %v446 = vld [vmem:[#allocation2 + $0x6f8] sm:$0xff]
    %v447 = vld [vmem:[#allocation2 + $0x700] sm:$0xff]
    %v448 = vld [vmem:[#allocation2 + $0x708] sm:$0xff]
    %v449 = vld [vmem:[#allocation2 + $0x710] sm:$0xff]
    %v450 = vld [vmem:[#allocation2 + $0x718] sm:$0xff]
    %v451 = vld [vmem:[#allocation2 + $0x720] sm:$0xff]
    %v452 = vld [vmem:[#allocation2 + $0x728] sm:$0xff]
    %v453 = vld [vmem:[#allocation2 + $0x730] sm:$0xff]
    %v454 = vld [vmem:[#allocation2 + $0x738] sm:$0xff]
    %v455 = vld [vmem:[#allocation2 + $0x740] sm:$0xff]
    %v456 = vld [vmem:[#allocation2 + $0x748] sm:$0xff]
    %v457 = vld [vmem:[#allocation2 + $0x750] sm:$0xff]
    %v458 = vld [vmem:[#allocation2 + $0x758] sm:$0xff]
    %v459 = vld [vmem:[#allocation2 + $0x760] sm:$0xff]
    %v460 = vld [vmem:[#allocation2 + $0x768] sm:$0xff]
    %v461 = vld [vmem:[#allocation2 + $0x770] sm:$0xff]
    %v462 = vld [vmem:[#allocation2 + $0x778] sm:$0xff]
    %v463 = vld [vmem:[%s4] sm:$0xff]
    %v465 = vperm.slane %v463, 0
    %v466 = vperm.slane %v463, 1
    %v467 = vperm.slane %v463, 2
    %v468 = vperm.slane %v463, 3
    %v469 = vperm.slane %v463, 4
    %v470 = vperm.slane %v463, 5
    %v471 = vperm.slane %v463, 6
    %v472 = vperm.slane %v463, 7
    %v482 = vsel %vm76, %v221, 0
    %484 = vmatpush.msra.mxu0 %v343
    %485 = vmatpush.msra.mxu0 %v335
    %486 = vmatpush.msra.mxu0 %v327
    %487 = vmatpush.msra.mxu0 %v319
    %488 = vmatpush.msra.mxu0 %v311
    %489 = vmatpush.msra.mxu0 %v303
    %490 = vmatpush.msra.mxu0 %v295
    %491 = vmatpush.msra.mxu0 %v287
    %492 = vmatpush.msra.mxu0 %v279
    %493 = vmatpush.msra.mxu0 %v271
    %494 = vmatpush.msra.mxu0 %v263
    %495 = vmatpush.msra.mxu0 %v255
    %496 = vmatpush.msra.mxu0 %v247
    %497 = vmatpush.msra.mxu0 %v239
    %498 = vmatpush.msra.mxu0 %v231
    %499 = vmatpush.msra.mxu0 %v223
    %500 = vmatmul.f32.gmra.mxu0 %v201
    %v501 = vpop.f32.mrf.mxu0
    %v502 = vadd.f32 %v465, %v501
    %503 = vdwg.mxu0
    %504 = vmatpush.msra.mxu0 0.0
    %505 = vmatpush.msra.mxu0 0.0
    %506 = vmatpush.msra.mxu0 %v455
    %507 = vmatpush.msra.mxu0 %v447
    %508 = vmatpush.msra.mxu0 %v439
    %509 = vmatpush.msra.mxu0 %v431
    %510 = vmatpush.msra.mxu0 %v423
    %511 = vmatpush.msra.mxu0 %v415
    %512 = vmatpush.msra.mxu0 %v407
    %513 = vmatpush.msra.mxu0 %v399
    %514 = vmatpush.msra.mxu0 %v391
    %515 = vmatpush.msra.mxu0 %v383
    %516 = vmatpush.msra.mxu0 %v375
    %517 = vmatpush.msra.mxu0 %v367
    %518 = vmatpush.msra.mxu0 %v359
    %519 = vmatpush.msra.mxu0 %v351
    %520 = vmatmul.f32.gmra.mxu0 %v482
    %v521 = vpop.f32.mrf.mxu0
    %v522 = vadd.f32 %v502, %v521
    %523 = vdwg.mxu0
    %524 = vmatpush.msra.mxu0 %v344
    %525 = vmatpush.msra.mxu0 %v336
    %526 = vmatpush.msra.mxu0 %v328
    %527 = vmatpush.msra.mxu0 %v320
    %528 = vmatpush.msra.mxu0 %v312
    %529 = vmatpush.msra.mxu0 %v304
    %530 = vmatpush.msra.mxu0 %v296
    %531 = vmatpush.msra.mxu0 %v288
    %532 = vmatpush.msra.mxu0 %v280
    %533 = vmatpush.msra.mxu0 %v272
    %534 = vmatpush.msra.mxu0 %v264
    %535 = vmatpush.msra.mxu0 %v256
    %536 = vmatpush.msra.mxu0 %v248
    %537 = vmatpush.msra.mxu0 %v240
    %538 = vmatpush.msra.mxu0 %v232
    %539 = vmatpush.msra.mxu0 %v224
    %540 = vmatmul.f32.gmra.mxu0 %v201
    %v541 = vpop.f32.mrf.mxu0
    %v542 = vadd.f32 %v466, %v541
    %543 = vdwg.mxu0
    %544 = vmatpush.msra.mxu0 0.0
    %545 = vmatpush.msra.mxu0 0.0
    %546 = vmatpush.msra.mxu0 %v456
    %547 = vmatpush.msra.mxu0 %v448
    %548 = vmatpush.msra.mxu0 %v440
    %549 = vmatpush.msra.mxu0 %v432
    %550 = vmatpush.msra.mxu0 %v424
    %551 = vmatpush.msra.mxu0 %v416
    %552 = vmatpush.msra.mxu0 %v408
    %553 = vmatpush.msra.mxu0 %v400
    %554 = vmatpush.msra.mxu0 %v392
    %555 = vmatpush.msra.mxu0 %v384
    %556 = vmatpush.msra.mxu0 %v376
    %557 = vmatpush.msra.mxu0 %v368
    %558 = vmatpush.msra.mxu0 %v360
    %559 = vmatpush.msra.mxu0 %v352
    %560 = vmatmul.f32.gmra.mxu0 %v482
    %v561 = vpop.f32.mrf.mxu0
    %v562 = vadd.f32 %v542, %v561
    %563 = vdwg.mxu0
    %564 = vmatpush.msra.mxu0 %v345
    %565 = vmatpush.msra.mxu0 %v337
    %566 = vmatpush.msra.mxu0 %v329
    %567 = vmatpush.msra.mxu0 %v321
    %568 = vmatpush.msra.mxu0 %v313
    %569 = vmatpush.msra.mxu0 %v305
    %570 = vmatpush.msra.mxu0 %v297
    %571 = vmatpush.msra.mxu0 %v289
    %572 = vmatpush.msra.mxu0 %v281
    %573 = vmatpush.msra.mxu0 %v273
    %574 = vmatpush.msra.mxu0 %v265
    %575 = vmatpush.msra.mxu0 %v257
    %576 = vmatpush.msra.mxu0 %v249
    %577 = vmatpush.msra.mxu0 %v241
    %578 = vmatpush.msra.mxu0 %v233
    %579 = vmatpush.msra.mxu0 %v225
    %580 = vmatmul.f32.gmra.mxu0 %v201
    %v581 = vpop.f32.mrf.mxu0
    %v582 = vadd.f32 %v467, %v581
    %583 = vdwg.mxu0
    %584 = vmatpush.msra.mxu0 0.0
    %585 = vmatpush.msra.mxu0 0.0
    %586 = vmatpush.msra.mxu0 %v457
    %587 = vmatpush.msra.mxu0 %v449
    %588 = vmatpush.msra.mxu0 %v441
    %589 = vmatpush.msra.mxu0 %v433
    %590 = vmatpush.msra.mxu0 %v425
    %591 = vmatpush.msra.mxu0 %v417
    %592 = vmatpush.msra.mxu0 %v409
    %593 = vmatpush.msra.mxu0 %v401
    %594 = vmatpush.msra.mxu0 %v393
    %595 = vmatpush.msra.mxu0 %v385
    %596 = vmatpush.msra.mxu0 %v377
    %597 = vmatpush.msra.mxu0 %v369
    %598 = vmatpush.msra.mxu0 %v361
    %599 = vmatpush.msra.mxu0 %v353
    %600 = vmatmul.f32.gmra.mxu0 %v482
    %v601 = vpop.f32.mrf.mxu0
    %v602 = vadd.f32 %v582, %v601
    %603 = vdwg.mxu0
    %604 = vmatpush.msra.mxu0 %v346
    %605 = vmatpush.msra.mxu0 %v338
    %606 = vmatpush.msra.mxu0 %v330
    %607 = vmatpush.msra.mxu0 %v322
    %608 = vmatpush.msra.mxu0 %v314
    %609 = vmatpush.msra.mxu0 %v306
    %610 = vmatpush.msra.mxu0 %v298
    %611 = vmatpush.msra.mxu0 %v290
    %612 = vmatpush.msra.mxu0 %v282
    %613 = vmatpush.msra.mxu0 %v274
    %614 = vmatpush.msra.mxu0 %v266
    %615 = vmatpush.msra.mxu0 %v258
    %616 = vmatpush.msra.mxu0 %v250
    %617 = vmatpush.msra.mxu0 %v242
    %618 = vmatpush.msra.mxu0 %v234
    %619 = vmatpush.msra.mxu0 %v226
    %620 = vmatmul.f32.gmra.mxu0 %v201
    %v621 = vpop.f32.mrf.mxu0
    %v622 = vadd.f32 %v468, %v621
    %623 = vdwg.mxu0
    %624 = vmatpush.msra.mxu0 0.0
    %625 = vmatpush.msra.mxu0 0.0
    %626 = vmatpush.msra.mxu0 %v458
    %627 = vmatpush.msra.mxu0 %v450
    %628 = vmatpush.msra.mxu0 %v442
    %629 = vmatpush.msra.mxu0 %v434
    %630 = vmatpush.msra.mxu0 %v426
    %631 = vmatpush.msra.mxu0 %v418
    %632 = vmatpush.msra.mxu0 %v410
    %633 = vmatpush.msra.mxu0 %v402
    %634 = vmatpush.msra.mxu0 %v394
    %635 = vmatpush.msra.mxu0 %v386
    %636 = vmatpush.msra.mxu0 %v378
    %637 = vmatpush.msra.mxu0 %v370
    %638 = vmatpush.msra.mxu0 %v362
    %639 = vmatpush.msra.mxu0 %v354
    %640 = vmatmul.f32.gmra.mxu0 %v482
    %v641 = vpop.f32.mrf.mxu0
    %v642 = vadd.f32 %v622, %v641
    %643 = vdwg.mxu0
    %644 = vmatpush.msra.mxu0 %v347
    %645 = vmatpush.msra.mxu0 %v339
    %646 = vmatpush.msra.mxu0 %v331
    %647 = vmatpush.msra.mxu0 %v323
    %648 = vmatpush.msra.mxu0 %v315
    %649 = vmatpush.msra.mxu0 %v307
    %650 = vmatpush.msra.mxu0 %v299
    %651 = vmatpush.msra.mxu0 %v291
    %652 = vmatpush.msra.mxu0 %v283
    %653 = vmatpush.msra.mxu0 %v275
    %654 = vmatpush.msra.mxu0 %v267
    %655 = vmatpush.msra.mxu0 %v259
    %656 = vmatpush.msra.mxu0 %v251
    %657 = vmatpush.msra.mxu0 %v243
    %658 = vmatpush.msra.mxu0 %v235
    %659 = vmatpush.msra.mxu0 %v227
    %660 = vmatmul.f32.gmra.mxu0 %v201
    %v661 = vpop.f32.mrf.mxu0
    %v662 = vadd.f32 %v469, %v661
    %663 = vdwg.mxu0
    %664 = vmatpush.msra.mxu0 0.0
    %665 = vmatpush.msra.mxu0 0.0
    %666 = vmatpush.msra.mxu0 %v459
    %667 = vmatpush.msra.mxu0 %v451
    %668 = vmatpush.msra.mxu0 %v443
    %669 = vmatpush.msra.mxu0 %v435
    %670 = vmatpush.msra.mxu0 %v427
    %671 = vmatpush.msra.mxu0 %v419
    %672 = vmatpush.msra.mxu0 %v411
    %673 = vmatpush.msra.mxu0 %v403
    %674 = vmatpush.msra.mxu0 %v395
    %675 = vmatpush.msra.mxu0 %v387
    %676 = vmatpush.msra.mxu0 %v379
    %677 = vmatpush.msra.mxu0 %v371
    %678 = vmatpush.msra.mxu0 %v363
    %679 = vmatpush.msra.mxu0 %v355
    %680 = vmatmul.f32.gmra.mxu0 %v482
    %v681 = vpop.f32.mrf.mxu0
    %v682 = vadd.f32 %v662, %v681
    %683 = vdwg.mxu0
    %684 = vmatpush.msra.mxu0 %v348
    %685 = vmatpush.msra.mxu0 %v340
    %686 = vmatpush.msra.mxu0 %v332
    %687 = vmatpush.msra.mxu0 %v324
    %688 = vmatpush.msra.mxu0 %v316
    %689 = vmatpush.msra.mxu0 %v308
    %690 = vmatpush.msra.mxu0 %v300
    %691 = vmatpush.msra.mxu0 %v292
    %692 = vmatpush.msra.mxu0 %v284
    %693 = vmatpush.msra.mxu0 %v276
    %694 = vmatpush.msra.mxu0 %v268
    %695 = vmatpush.msra.mxu0 %v260
    %696 = vmatpush.msra.mxu0 %v252
    %697 = vmatpush.msra.mxu0 %v244
    %698 = vmatpush.msra.mxu0 %v236
    %699 = vmatpush.msra.mxu0 %v228
    %700 = vmatmul.f32.gmra.mxu0 %v201
    %v701 = vpop.f32.mrf.mxu0
    %v702 = vadd.f32 %v470, %v701
    %703 = vdwg.mxu0
    %704 = vmatpush.msra.mxu0 0.0
    %705 = vmatpush.msra.mxu0 0.0
    %706 = vmatpush.msra.mxu0 %v460
    %707 = vmatpush.msra.mxu0 %v452
    %708 = vmatpush.msra.mxu0 %v444
    %709 = vmatpush.msra.mxu0 %v436
    %710 = vmatpush.msra.mxu0 %v428
    %711 = vmatpush.msra.mxu0 %v420
    %712 = vmatpush.msra.mxu0 %v412
    %713 = vmatpush.msra.mxu0 %v404
    %714 = vmatpush.msra.mxu0 %v396
    %715 = vmatpush.msra.mxu0 %v388
    %716 = vmatpush.msra.mxu0 %v380
    %717 = vmatpush.msra.mxu0 %v372
    %718 = vmatpush.msra.mxu0 %v364
    %719 = vmatpush.msra.mxu0 %v356
    %720 = vmatmul.f32.gmra.mxu0 %v482
    %v721 = vpop.f32.mrf.mxu0
    %v722 = vadd.f32 %v702, %v721
    %723 = vdwg.mxu0
    %724 = vmatpush.msra.mxu0 %v349
    %725 = vmatpush.msra.mxu0 %v341
    %726 = vmatpush.msra.mxu0 %v333
    %727 = vmatpush.msra.mxu0 %v325
    %728 = vmatpush.msra.mxu0 %v317
    %729 = vmatpush.msra.mxu0 %v309
    %730 = vmatpush.msra.mxu0 %v301
    %731 = vmatpush.msra.mxu0 %v293
    %732 = vmatpush.msra.mxu0 %v285
    %733 = vmatpush.msra.mxu0 %v277
    %734 = vmatpush.msra.mxu0 %v269
    %735 = vmatpush.msra.mxu0 %v261
    %736 = vmatpush.msra.mxu0 %v253
    %737 = vmatpush.msra.mxu0 %v245
    %738 = vmatpush.msra.mxu0 %v237
    %739 = vmatpush.msra.mxu0 %v229
    %740 = vmatmul.f32.gmra.mxu0 %v201
    %v741 = vpop.f32.mrf.mxu0
    %v742 = vadd.f32 %v471, %v741
    %743 = vdwg.mxu0
    %744 = vmatpush.msra.mxu0 0.0
    %745 = vmatpush.msra.mxu0 0.0
    %746 = vmatpush.msra.mxu0 %v461
    %747 = vmatpush.msra.mxu0 %v453
    %748 = vmatpush.msra.mxu0 %v445
    %749 = vmatpush.msra.mxu0 %v437
    %750 = vmatpush.msra.mxu0 %v429
    %751 = vmatpush.msra.mxu0 %v421
    %752 = vmatpush.msra.mxu0 %v413
    %753 = vmatpush.msra.mxu0 %v405
    %754 = vmatpush.msra.mxu0 %v397
    %755 = vmatpush.msra.mxu0 %v389
    %756 = vmatpush.msra.mxu0 %v381
    %757 = vmatpush.msra.mxu0 %v373
    %758 = vmatpush.msra.mxu0 %v365
    %759 = vmatpush.msra.mxu0 %v357
    %760 = vmatmul.f32.gmra.mxu0 %v482
    %v761 = vpop.f32.mrf.mxu0
    %v762 = vadd.f32 %v742, %v761
    %763 = vdwg.mxu0
    %764 = vmatpush.msra.mxu0 %v350
    %765 = vmatpush.msra.mxu0 %v342
    %766 = vmatpush.msra.mxu0 %v334
    %767 = vmatpush.msra.mxu0 %v326
    %768 = vmatpush.msra.mxu0 %v318
    %769 = vmatpush.msra.mxu0 %v310
    %770 = vmatpush.msra.mxu0 %v302
    %771 = vmatpush.msra.mxu0 %v294
    %772 = vmatpush.msra.mxu0 %v286
    %773 = vmatpush.msra.mxu0 %v278
    %774 = vmatpush.msra.mxu0 %v270
    %775 = vmatpush.msra.mxu0 %v262
    %776 = vmatpush.msra.mxu0 %v254
    %777 = vmatpush.msra.mxu0 %v246
    %778 = vmatpush.msra.mxu0 %v238
    %779 = vmatpush.msra.mxu0 %v230
    %780 = vmatmul.f32.gmra.mxu0 %v201
    %v781 = vpop.f32.mrf.mxu0
    %v782 = vadd.f32 %v472, %v781
    %783 = vdwg.mxu0
    %784 = vmatpush.msra.mxu0 0.0
    %785 = vmatpush.msra.mxu0 0.0
    %786 = vmatpush.msra.mxu0 %v462
    %787 = vmatpush.msra.mxu0 %v454
    %788 = vmatpush.msra.mxu0 %v446
    %789 = vmatpush.msra.mxu0 %v438
    %790 = vmatpush.msra.mxu0 %v430
    %791 = vmatpush.msra.mxu0 %v422
    %792 = vmatpush.msra.mxu0 %v414
    %793 = vmatpush.msra.mxu0 %v406
    %794 = vmatpush.msra.mxu0 %v398
    %795 = vmatpush.msra.mxu0 %v390
    %796 = vmatpush.msra.mxu0 %v382
    %797 = vmatpush.msra.mxu0 %v374
    %798 = vmatpush.msra.mxu0 %v366
    %799 = vmatpush.msra.mxu0 %v358
    %800 = vmatmul.f32.gmra.mxu0 %v482
    %v801 = vpop.f32.mrf.mxu0
    %v802 = vadd.f32 %v782, %v801
    %803 = vdwg.mxu0
    %v812 = vrot.slane %v562, 4
    %v813 = vrot.slane %v642, 4
    %v814 = vrot.slane %v722, 4
    %v815 = vrot.slane %v802, 4
    %vm816 = vcmask 1043456
    %v817 = vsel %vm816, %v522, %v812
    %v818 = vsel %vm816, %v602, %v813
    %v819 = vsel %vm816, %v682, %v814
    %v820 = vsel %vm816, %v762, %v815
    %825 = vst [vmem:[#allocation5] sm:$0xff] %v817
    %826 = vst [vmem:[#allocation5 + $0x8] sm:$0xff] %v818
    %827 = vst [vmem:[#allocation5 + $0x10] sm:$0xff] %v819
    %828 = vst [vmem:[#allocation5 + $0x18] sm:$0xff] %v820
    %vm829 = vcmp.gt.f32.partialorder %v522, 0.0
    %vm830 = vcmp.gt.f32.partialorder %v562, 0.0
    %vm831 = vcmp.gt.f32.partialorder %v602, 0.0
    %vm832 = vcmp.gt.f32.partialorder %v642, 0.0
    %vm833 = vcmp.gt.f32.partialorder %v682, 0.0
    %vm834 = vcmp.gt.f32.partialorder %v722, 0.0
    %vm835 = vcmp.gt.f32.partialorder %v762, 0.0
    %vm836 = vcmp.gt.f32.partialorder %v802, 0.0
    %v837 = vmin.f32 %v522, 0.0
    %v838 = vmin.f32 %v562, 0.0
    %v839 = vmin.f32 %v602, 0.0
    %v840 = vmin.f32 %v642, 0.0
    %v841 = vmin.f32 %v682, 0.0
    %v842 = vmin.f32 %v722, 0.0
    %v843 = vmin.f32 %v762, 0.0
    %v844 = vmin.f32 %v802, 0.0
    %v845 = vmul.f32 %v837, 1.442695
    %v846 = vpow.pop %v845
    %v847 = vmul.f32 %v838, 1.442695
    %v848 = vpow.pop %v847
    %v849 = vmul.f32 %v839, 1.442695
    %v850 = vpow.pop %v849
    %v851 = vmul.f32 %v840, 1.442695
    %v852 = vpow.pop %v851
    %v853 = vmul.f32 %v841, 1.442695
    %v854 = vpow.pop %v853
    %v855 = vmul.f32 %v842, 1.442695
    %v856 = vpow.pop %v855
    %v857 = vmul.f32 %v843, 1.442695
    %v858 = vpow.pop %v857
    %v859 = vmul.f32 %v844, 1.442695
    %v860 = vpow.pop %v859
    %v861 = vsub.f32 %v846, 1.0
    %v862 = vsub.f32 %v848, 1.0
    %v863 = vsub.f32 %v850, 1.0
    %v864 = vsub.f32 %v852, 1.0
    %v865 = vsub.f32 %v854, 1.0
    %v866 = vsub.f32 %v856, 1.0
    %v867 = vsub.f32 %v858, 1.0
    %v868 = vsub.f32 %v860, 1.0
    %v869 = vsel %vm829, %v522, %v861
    %v870 = vsel %vm830, %v562, %v862
    %v871 = vsel %vm831, %v602, %v863
    %v872 = vsel %vm832, %v642, %v864
    %v873 = vsel %vm833, %v682, %v865
    %v874 = vsel %vm834, %v722, %v866
    %v875 = vsel %vm835, %v762, %v867
    %v876 = vsel %vm836, %v802, %v868
    %v877 = vld [vmem:[%s5] sm:$0xff]
    %v878 = vld [vmem:[%s5 + $0x8] sm:$0xff]
    %v879 = vld [vmem:[%s5 + $0x10] sm:$0xff]
    %v880 = vld [vmem:[%s5 + $0x18] sm:$0xff]
    %v881 = vld [vmem:[%s5 + $0x20] sm:$0xff]
    %v882 = vld [vmem:[%s5 + $0x28] sm:$0xff]
    %v883 = vld [vmem:[%s5 + $0x30] sm:$0xff]
    %v884 = vld [vmem:[%s5 + $0x38] sm:$0xff]
    %v885 = vld [vmem:[%s5 + $0x40] sm:$0xff]
    %v886 = vld [vmem:[%s5 + $0x48] sm:$0xff]
    %v887 = vld [vmem:[%s5 + $0x50] sm:$0xff]
    %v888 = vld [vmem:[%s5 + $0x58] sm:$0xff]
    %v889 = vld [vmem:[%s5 + $0x60] sm:$0xff]
    %v890 = vld [vmem:[%s5 + $0x68] sm:$0xff]
    %v891 = vld [vmem:[%s5 + $0x70] sm:$0xff]
    %v892 = vld [vmem:[%s5 + $0x78] sm:$0xff]
    %v893 = vld [vmem:[%s5 + $0x80] sm:$0xff]
    %v894 = vld [vmem:[%s5 + $0x88] sm:$0xff]
    %v895 = vld [vmem:[%s5 + $0x90] sm:$0xff]
    %v896 = vld [vmem:[%s5 + $0x98] sm:$0xff]
    %v897 = vld [vmem:[%s5 + $0xa0] sm:$0xff]
    %v898 = vld [vmem:[%s5 + $0xa8] sm:$0xff]
    %v899 = vld [vmem:[%s5 + $0xb0] sm:$0xff]
    %v900 = vld [vmem:[%s5 + $0xb8] sm:$0xff]
    %v901 = vld [vmem:[%s5 + $0xc0] sm:$0xff]
    %v902 = vld [vmem:[%s5 + $0xc8] sm:$0xff]
    %v903 = vld [vmem:[%s5 + $0xd0] sm:$0xff]
    %v904 = vld [vmem:[%s5 + $0xd8] sm:$0xff]
    %v905 = vld [vmem:[%s5 + $0xe0] sm:$0xff]
    %v906 = vld [vmem:[%s5 + $0xe8] sm:$0xff]
    %v907 = vld [vmem:[%s5 + $0xf0] sm:$0xff]
    %v908 = vld [vmem:[%s5 + $0xf8] sm:$0xff]
    %v909 = vld [vmem:[%s5 + $0x100] sm:$0xff]
    %v910 = vld [vmem:[%s5 + $0x108] sm:$0xff]
    %v911 = vld [vmem:[%s5 + $0x110] sm:$0xff]
    %v912 = vld [vmem:[%s5 + $0x118] sm:$0xff]
    %v913 = vld [vmem:[%s5 + $0x120] sm:$0xff]
    %v914 = vld [vmem:[%s5 + $0x128] sm:$0xff]
    %v915 = vld [vmem:[%s5 + $0x130] sm:$0xff]
    %v916 = vld [vmem:[%s5 + $0x138] sm:$0xff]
    %v917 = vld [vmem:[%s5 + $0x140] sm:$0xff]
    %v918 = vld [vmem:[%s5 + $0x148] sm:$0xff]
    %v919 = vld [vmem:[%s5 + $0x150] sm:$0xff]
    %v920 = vld [vmem:[%s5 + $0x158] sm:$0xff]
    %v921 = vld [vmem:[%s5 + $0x160] sm:$0xff]
    %v922 = vld [vmem:[%s5 + $0x168] sm:$0xff]
    %v923 = vld [vmem:[%s5 + $0x170] sm:$0xff]
    %v924 = vld [vmem:[%s5 + $0x178] sm:$0xff]
    %v925 = vld [vmem:[%s5 + $0x180] sm:$0xff]
    %v926 = vld [vmem:[%s5 + $0x188] sm:$0xff]
    %v927 = vld [vmem:[%s5 + $0x190] sm:$0xff]
    %v928 = vld [vmem:[%s5 + $0x198] sm:$0xff]
    %v929 = vld [vmem:[%s5 + $0x1a0] sm:$0xff]
    %v930 = vld [vmem:[%s5 + $0x1a8] sm:$0xff]
    %v931 = vld [vmem:[%s5 + $0x1b0] sm:$0xff]
    %v932 = vld [vmem:[%s5 + $0x1b8] sm:$0xff]
    %v933 = vld [vmem:[%s5 + $0x1c0] sm:$0xff]
    %v934 = vld [vmem:[%s5 + $0x1c8] sm:$0xff]
    %v935 = vld [vmem:[%s5 + $0x1d0] sm:$0xff]
    %v936 = vld [vmem:[%s5 + $0x1d8] sm:$0xff]
    %v937 = vld [vmem:[%s5 + $0x1e0] sm:$0xff]
    %v938 = vld [vmem:[%s5 + $0x1e8] sm:$0xff]
    %v939 = vld [vmem:[%s5 + $0x1f0] sm:$0xff]
    %v940 = vld [vmem:[%s5 + $0x1f8] sm:$0xff]
    %v941 = vld [vmem:[%s5 + $0x200] sm:$0xff]
    %v942 = vld [vmem:[%s5 + $0x208] sm:$0xff]
    %v943 = vld [vmem:[%s5 + $0x210] sm:$0xff]
    %v944 = vld [vmem:[%s5 + $0x218] sm:$0xff]
    %v945 = vld [vmem:[%s5 + $0x220] sm:$0xff]
    %v946 = vld [vmem:[%s5 + $0x228] sm:$0xff]
    %v947 = vld [vmem:[%s5 + $0x230] sm:$0xff]
    %v948 = vld [vmem:[%s5 + $0x238] sm:$0xff]
    %v949 = vld [vmem:[%s5 + $0x240] sm:$0xff]
    %v950 = vld [vmem:[%s5 + $0x248] sm:$0xff]
    %v951 = vld [vmem:[%s5 + $0x250] sm:$0xff]
    %v952 = vld [vmem:[%s5 + $0x258] sm:$0xff]
    %v953 = vld [vmem:[%s5 + $0x260] sm:$0xff]
    %v954 = vld [vmem:[%s5 + $0x268] sm:$0xff]
    %v955 = vld [vmem:[%s5 + $0x270] sm:$0xff]
    %v956 = vld [vmem:[%s5 + $0x278] sm:$0xff]
    %v957 = vld [vmem:[%s5 + $0x280] sm:$0xff]
    %v958 = vld [vmem:[%s5 + $0x288] sm:$0xff]
    %v959 = vld [vmem:[%s5 + $0x290] sm:$0xff]
    %v960 = vld [vmem:[%s5 + $0x298] sm:$0xff]
    %v961 = vld [vmem:[%s5 + $0x2a0] sm:$0xff]
    %v962 = vld [vmem:[%s5 + $0x2a8] sm:$0xff]
    %v963 = vld [vmem:[%s5 + $0x2b0] sm:$0xff]
    %v964 = vld [vmem:[%s5 + $0x2b8] sm:$0xff]
    %v965 = vld [vmem:[%s5 + $0x2c0] sm:$0xff]
    %v966 = vld [vmem:[%s5 + $0x2c8] sm:$0xff]
    %v967 = vld [vmem:[%s5 + $0x2d0] sm:$0xff]
    %v968 = vld [vmem:[%s5 + $0x2d8] sm:$0xff]
    %v969 = vld [vmem:[%s5 + $0x2e0] sm:$0xff]
    %v970 = vld [vmem:[%s5 + $0x2e8] sm:$0xff]
    %v971 = vld [vmem:[%s5 + $0x2f0] sm:$0xff]
    %v972 = vld [vmem:[%s5 + $0x2f8] sm:$0xff]
    %v973 = vld [vmem:[%s5 + $0x300] sm:$0xff]
    %v974 = vld [vmem:[%s5 + $0x308] sm:$0xff]
    %v975 = vld [vmem:[%s5 + $0x310] sm:$0xff]
    %v976 = vld [vmem:[%s5 + $0x318] sm:$0xff]
    %v977 = vld [vmem:[%s5 + $0x320] sm:$0xff]
    %v978 = vld [vmem:[%s5 + $0x328] sm:$0xff]
    %v979 = vld [vmem:[%s5 + $0x330] sm:$0xff]
    %v980 = vld [vmem:[%s5 + $0x338] sm:$0xff]
    %v981 = vld [vmem:[%s5 + $0x340] sm:$0xff]
    %v982 = vld [vmem:[%s5 + $0x348] sm:$0xff]
    %v983 = vld [vmem:[%s5 + $0x350] sm:$0xff]
    %v984 = vld [vmem:[%s5 + $0x358] sm:$0xff]
    %v985 = vld [vmem:[%s5 + $0x360] sm:$0xff]
    %v986 = vld [vmem:[%s5 + $0x368] sm:$0xff]
    %v987 = vld [vmem:[%s5 + $0x370] sm:$0xff]
    %v988 = vld [vmem:[%s5 + $0x378] sm:$0xff]
    %v989 = vld [vmem:[%s5 + $0x380] sm:$0xff]
    %v990 = vld [vmem:[%s5 + $0x388] sm:$0xff]
    %v991 = vld [vmem:[%s5 + $0x390] sm:$0xff]
    %v992 = vld [vmem:[%s5 + $0x398] sm:$0xff]
    %v993 = vld [vmem:[%s5 + $0x3a0] sm:$0xff]
    %v994 = vld [vmem:[%s5 + $0x3a8] sm:$0xff]
    %v995 = vld [vmem:[%s5 + $0x3b0] sm:$0xff]
    %v996 = vld [vmem:[%s5 + $0x3b8] sm:$0xff]
    %v997 = vld [vmem:[%s5 + $0x3c0] sm:$0xff]
    %v998 = vld [vmem:[%s5 + $0x3c8] sm:$0xff]
    %v999 = vld [vmem:[%s5 + $0x3d0] sm:$0xff]
    %v1000 = vld [vmem:[%s5 + $0x3d8] sm:$0xff]
    %v1001 = vld [vmem:[%s5 + $0x3e0] sm:$0xff]
    %v1002 = vld [vmem:[%s5 + $0x3e8] sm:$0xff]
    %v1003 = vld [vmem:[%s5 + $0x3f0] sm:$0xff]
    %v1004 = vld [vmem:[%s5 + $0x3f8] sm:$0xff]
    %1005 = vmatpush.msra.mxu0 %v892
    %1006 = vmatpush.msra.mxu0 %v891
    %1007 = vmatpush.msra.mxu0 %v890
    %1008 = vmatpush.msra.mxu0 %v889
    %1009 = vmatpush.msra.mxu0 %v888
    %1010 = vmatpush.msra.mxu0 %v887
    %1011 = vmatpush.msra.mxu0 %v886
    %1012 = vmatpush.msra.mxu0 %v885
    %1013 = vmatpush.msra.mxu0 %v884
    %1014 = vmatpush.msra.mxu0 %v883
    %1015 = vmatpush.msra.mxu0 %v882
    %1016 = vmatpush.msra.mxu0 %v881
    %1017 = vmatpush.msra.mxu0 %v880
    %1018 = vmatpush.msra.mxu0 %v879
    %1019 = vmatpush.msra.mxu0 %v878
    %1020 = vmatpush.msra.mxu0 %v877
    %1021 = vmatmul.f32.gmra.mxu0 %v869
    %v1022 = vpop.f32.mrf.mxu0
    %v1023 = vadd.f32 0.0, %v1022
    %1024 = vdwg.mxu0
    %1025 = vmatpush.msra.mxu0 %v908
    %1026 = vmatpush.msra.mxu0 %v907
    %1027 = vmatpush.msra.mxu0 %v906
    %1028 = vmatpush.msra.mxu0 %v905
    %1029 = vmatpush.msra.mxu0 %v904
    %1030 = vmatpush.msra.mxu0 %v903
    %1031 = vmatpush.msra.mxu0 %v902
    %1032 = vmatpush.msra.mxu0 %v901
    %1033 = vmatpush.msra.mxu0 %v900
    %1034 = vmatpush.msra.mxu0 %v899
    %1035 = vmatpush.msra.mxu0 %v898
    %1036 = vmatpush.msra.mxu0 %v897
    %1037 = vmatpush.msra.mxu0 %v896
    %1038 = vmatpush.msra.mxu0 %v895
    %1039 = vmatpush.msra.mxu0 %v894
    %1040 = vmatpush.msra.mxu0 %v893
    %1041 = vmatmul.f32.gmra.mxu0 %v870
    %v1042 = vpop.f32.mrf.mxu0
    %v1043 = vadd.f32 %v1023, %v1042
    %1044 = vdwg.mxu0
    %1045 = vmatpush.msra.mxu0 %v924
    %1046 = vmatpush.msra.mxu0 %v923
    %1047 = vmatpush.msra.mxu0 %v922
    %1048 = vmatpush.msra.mxu0 %v921
    %1049 = vmatpush.msra.mxu0 %v920
    %1050 = vmatpush.msra.mxu0 %v919
    %1051 = vmatpush.msra.mxu0 %v918
    %1052 = vmatpush.msra.mxu0 %v917
    %1053 = vmatpush.msra.mxu0 %v916
    %1054 = vmatpush.msra.mxu0 %v915
    %1055 = vmatpush.msra.mxu0 %v914
    %1056 = vmatpush.msra.mxu0 %v913
    %1057 = vmatpush.msra.mxu0 %v912
    %1058 = vmatpush.msra.mxu0 %v911
    %1059 = vmatpush.msra.mxu0 %v910
    %1060 = vmatpush.msra.mxu0 %v909
    %1061 = vmatmul.f32.gmra.mxu0 %v871
    %v1062 = vpop.f32.mrf.mxu0
    %v1063 = vadd.f32 %v1043, %v1062
    %1064 = vdwg.mxu0
    %1065 = vmatpush.msra.mxu0 %v940
    %1066 = vmatpush.msra.mxu0 %v939
    %1067 = vmatpush.msra.mxu0 %v938
    %1068 = vmatpush.msra.mxu0 %v937
    %1069 = vmatpush.msra.mxu0 %v936
    %1070 = vmatpush.msra.mxu0 %v935
    %1071 = vmatpush.msra.mxu0 %v934
    %1072 = vmatpush.msra.mxu0 %v933
    %1073 = vmatpush.msra.mxu0 %v932
    %1074 = vmatpush.msra.mxu0 %v931
    %1075 = vmatpush.msra.mxu0 %v930
    %1076 = vmatpush.msra.mxu0 %v929
    %1077 = vmatpush.msra.mxu0 %v928
    %1078 = vmatpush.msra.mxu0 %v927
    %1079 = vmatpush.msra.mxu0 %v926
    %1080 = vmatpush.msra.mxu0 %v925
    %1081 = vmatmul.f32.gmra.mxu0 %v872
    %v1082 = vpop.f32.mrf.mxu0
    %v1083 = vadd.f32 %v1063, %v1082
    %1084 = vdwg.mxu0
    %1085 = vmatpush.msra.mxu0 %v956
    %1086 = vmatpush.msra.mxu0 %v955
    %1087 = vmatpush.msra.mxu0 %v954
    %1088 = vmatpush.msra.mxu0 %v953
    %1089 = vmatpush.msra.mxu0 %v952
    %1090 = vmatpush.msra.mxu0 %v951
    %1091 = vmatpush.msra.mxu0 %v950
    %1092 = vmatpush.msra.mxu0 %v949
    %1093 = vmatpush.msra.mxu0 %v948
    %1094 = vmatpush.msra.mxu0 %v947
    %1095 = vmatpush.msra.mxu0 %v946
    %1096 = vmatpush.msra.mxu0 %v945
    %1097 = vmatpush.msra.mxu0 %v944
    %1098 = vmatpush.msra.mxu0 %v943
    %1099 = vmatpush.msra.mxu0 %v942
    %1100 = vmatpush.msra.mxu0 %v941
    %1101 = vmatmul.f32.gmra.mxu0 %v873
    %v1102 = vpop.f32.mrf.mxu0
    %v1103 = vadd.f32 %v1083, %v1102
    %1104 = vdwg.mxu0
    %1105 = vmatpush.msra.mxu0 %v972
    %1106 = vmatpush.msra.mxu0 %v971
    %1107 = vmatpush.msra.mxu0 %v970
    %1108 = vmatpush.msra.mxu0 %v969
    %1109 = vmatpush.msra.mxu0 %v968
    %1110 = vmatpush.msra.mxu0 %v967
    %1111 = vmatpush.msra.mxu0 %v966
    %1112 = vmatpush.msra.mxu0 %v965
    %1113 = vmatpush.msra.mxu0 %v964
    %1114 = vmatpush.msra.mxu0 %v963
    %1115 = vmatpush.msra.mxu0 %v962
    %1116 = vmatpush.msra.mxu0 %v961
    %1117 = vmatpush.msra.mxu0 %v960
    %1118 = vmatpush.msra.mxu0 %v959
    %1119 = vmatpush.msra.mxu0 %v958
    %1120 = vmatpush.msra.mxu0 %v957
    %1121 = vmatmul.f32.gmra.mxu0 %v874
    %v1122 = vpop.f32.mrf.mxu0
    %v1123 = vadd.f32 %v1103, %v1122
    %1124 = vdwg.mxu0
    %1125 = vmatpush.msra.mxu0 %v988
    %1126 = vmatpush.msra.mxu0 %v987
    %1127 = vmatpush.msra.mxu0 %v986
    %1128 = vmatpush.msra.mxu0 %v985
    %1129 = vmatpush.msra.mxu0 %v984
    %1130 = vmatpush.msra.mxu0 %v983
    %1131 = vmatpush.msra.mxu0 %v982
    %1132 = vmatpush.msra.mxu0 %v981
    %1133 = vmatpush.msra.mxu0 %v980
    %1134 = vmatpush.msra.mxu0 %v979
    %1135 = vmatpush.msra.mxu0 %v978
    %1136 = vmatpush.msra.mxu0 %v977
    %1137 = vmatpush.msra.mxu0 %v976
    %1138 = vmatpush.msra.mxu0 %v975
    %1139 = vmatpush.msra.mxu0 %v974
    %1140 = vmatpush.msra.mxu0 %v973
    %1141 = vmatmul.f32.gmra.mxu0 %v875
    %v1142 = vpop.f32.mrf.mxu0
    %v1143 = vadd.f32 %v1123, %v1142
    %1144 = vdwg.mxu0
    %1145 = vmatpush.msra.mxu0 %v1004
    %1146 = vmatpush.msra.mxu0 %v1003
    %1147 = vmatpush.msra.mxu0 %v1002
    %1148 = vmatpush.msra.mxu0 %v1001
    %1149 = vmatpush.msra.mxu0 %v1000
    %1150 = vmatpush.msra.mxu0 %v999
    %1151 = vmatpush.msra.mxu0 %v998
    %1152 = vmatpush.msra.mxu0 %v997
    %1153 = vmatpush.msra.mxu0 %v996
    %1154 = vmatpush.msra.mxu0 %v995
    %1155 = vmatpush.msra.mxu0 %v994
    %1156 = vmatpush.msra.mxu0 %v993
    %1157 = vmatpush.msra.mxu0 %v992
    %1158 = vmatpush.msra.mxu0 %v991
    %1159 = vmatpush.msra.mxu0 %v990
    %1160 = vmatpush.msra.mxu0 %v989
    %1161 = vmatmul.f32.gmra.mxu0 %v876
    %v1162 = vpop.f32.mrf.mxu0
    %v1163 = vadd.f32 %v1143, %v1162
    %1164 = vdwg.mxu0
    %v1165 = vld [vmem:[%s6] sm:$0xff]
    %v1166 = vld [vmem:[%s6 + $0x8] sm:$0xff]
    %v1167 = vld [vmem:[%s6 + $0x10] sm:$0xff]
    %v1168 = vld [vmem:[%s6 + $0x18] sm:$0xff]
    %v1169 = vld [vmem:[%s6 + $0x20] sm:$0xff]
    %vm1170 = vcmask 326656
    %v1172 = vsel %vm1170, %v1163, 0
    %1174 = vmatpush.msra.mxu0 0.0
    %1175 = vmatpush.msra.mxu0 0.0
    %1176 = vmatpush.msra.mxu0 0.0
    %1177 = vmatpush.msra.mxu0 0.0
    %1178 = vmatpush.msra.mxu0 0.0
    %1179 = vmatpush.msra.mxu0 0.0
    %1180 = vmatpush.msra.mxu0 0.0
    %1181 = vmatpush.msra.mxu0 0.0
    %1182 = vmatpush.msra.mxu0 0.0
    %1183 = vmatpush.msra.mxu0 0.0
    %1184 = vmatpush.msra.mxu0 0.0
    %1185 = vmatpush.msra.mxu0 %v1169
    %1186 = vmatpush.msra.mxu0 %v1168
    %1187 = vmatpush.msra.mxu0 %v1167
    %1188 = vmatpush.msra.mxu0 %v1166
    %1189 = vmatpush.msra.mxu0 %v1165
    %1190 = vmatmul.f32.gmra.mxu0 %v1172
    %v1191 = vpop.f32.mrf.mxu0
    %v1192 = vadd.f32 0.0, %v1191
    %1193 = vdwg.mxu0
    %vm1194 = vcmask 322560
    %v1195 = vsel %vm1194, %v1192, 0.0
    %v1196 = vrot.slane %v1195, 4
    %v1197 = vadd.f32 %v1195, %v1196
    %v1198 = vrot.slane %v1197, 2
    %v1199 = vadd.f32 %v1197, %v1198
    %v1200 = vrot.slane %v1199, 1
    %v1201 = vadd.f32 %v1199, %v1200
    %v1202 = vmul.f32 %v1163, %v1163
    %v1204 = vsel %vm1170, %v1202, 0
    %1206 = vmatpush.msra.mxu0 0.0
    %1207 = vmatpush.msra.mxu0 0.0
    %1208 = vmatpush.msra.mxu0 0.0
    %1209 = vmatpush.msra.mxu0 0.0
    %1210 = vmatpush.msra.mxu0 0.0
    %1211 = vmatpush.msra.mxu0 0.0
    %1212 = vmatpush.msra.mxu0 0.0
    %1213 = vmatpush.msra.mxu0 0.0
    %1214 = vmatpush.msra.mxu0 0.0
    %1215 = vmatpush.msra.mxu0 0.0
    %1216 = vmatpush.msra.mxu0 0.0
    %1217 = vmatpush.msra.mxu0 %v1169
    %1218 = vmatpush.msra.mxu0 %v1168
    %1219 = vmatpush.msra.mxu0 %v1167
    %1220 = vmatpush.msra.mxu0 %v1166
    %1221 = vmatpush.msra.mxu0 %v1165
    %1222 = vmatmul.f32.gmra.mxu0 %v1204
    %v1223 = vpop.f32.mrf.mxu0
    %v1224 = vadd.f32 0.0, %v1223
    %1225 = vdwg.mxu0
    %v1226 = vsel %vm1194, %v1224, 0.0
    %v1227 = vrot.slane %v1226, 4
    %v1228 = vadd.f32 %v1226, %v1227
    %v1229 = vrot.slane %v1228, 2
    %v1230 = vadd.f32 %v1228, %v1229
    %v1231 = vrot.slane %v1230, 1
    %v1232 = vadd.f32 %v1230, %v1231
    %v1233 = vmul.f32 %v1201, %v1201
    %v1234 = vsub.f32 %v1232, %v1233
    %v1235 = vmul.f32 %v1234, 1.0256411
    %v1236 = vmax.f32 %v1235, 0.0
    %v1237 = vsub.f32 %v1163, %v1201
    %v1238 = vrsqrt.pop %v1236
    %v1239 = vmul.f32 %v1238, %v1236
    %v1240 = vmul.f32 %v1239, %v1238
    %v1241 = vmul.f32 0.5, %v1240
    %v1242 = vsub.f32 1.5, %v1241
    %v1243 = vmul.f32 %v1238, %v1242
    %v1244 = vmul.f32 %v1236, %v1243
    %vm1245 = vcmp.eq.f32.partialorder %v1236, inf
    %v1246 = vsel %vm1245, %v1236, %v1244
    %vm1247 = vcmp.eq.f32.partialorder %v1236, 0.0
    %v1248 = vand.u32 %v1236, 2147483648
    %v1249 = vsel %vm1247, %v1248, %v1246
    %v1250 = vadd.f32 %v1249, 0.001
    %v1251 = vrcp.pop %v1250
    %v1252 = vmul.f32 %v1250, %v1251
    %v1253 = vsub.f32 1.0, %v1252
    %v1254 = vmul.f32 %v1251, %v1253
    %v1255 = vadd.f32 %v1251, %v1254
    %vm1256 = vweird.f32 %v1250
    %vm1257 = vweird.f32 %v1251
    %vm1258 = vmor %vm1256, %vm1257
    %v1259 = vsel %vm1258, %v1251, %v1255
    %v1260 = vand.u32 2147483647, %v1250
    %vm1261 = vcmp.eq.f32.partialorder %v1260, 8.507059e+37
    %v1262 = vand.u32 %v1250, 2147483648
    %v1263 = vor.u32 1.1754944e-38, %v1262
    %v1264 = vsel %vm1261, %v1263, %v1259
    %v1265 = vmul.f32 1.0, %v1264
    %v1266 = vmul.f32 %v1237, %v1265
    %v1267 = vld [vmem:[%s7] sm:$0xff]
    %vm1268 = vcmask 31744
    %v1270 = vsel %vm1268, %v1267, 0
    %v1273 = vsel %vm816, %v1266, 0
    %1275 = vmatpush.msra.mxu0 0.0
    %1276 = vmatpush.msra.mxu0 0.0
    %1277 = vmatpush.msra.mxu0 0.0
    %1278 = vmatpush.msra.mxu0 0.0
    %1279 = vmatpush.msra.mxu0 0.0
    %1280 = vmatpush.msra.mxu0 0.0
    %1281 = vmatpush.msra.mxu0 0.0
    %1282 = vmatpush.msra.mxu0 0.0
    %1283 = vmatpush.msra.mxu0 0.0
    %1284 = vmatpush.msra.mxu0 0.0
    %1285 = vmatpush.msra.mxu0 0.0
    %1286 = vmatpush.msra.mxu0 0.0
    %1287 = vmatpush.msra.mxu0 0.0
    %1288 = vmatpush.msra.mxu0 0.0
    %1289 = vmatpush.msra.mxu0 0.0
    %1290 = vmatpush.msra.mxu0 %v1273
    %1291 = vmatmul.f32.gmra.mxu0 %v1270
    %v1292 = vpop.f32.mrf.mxu0
    %v1293 = vadd.f32 0.0, %v1292
    %1294 = vdwg.mxu0
    %v1295 = vld [vmem:[%s9] sm:$0xff]
    %v1296 = vmul.f32 %v1293, %v1295
    %v1297 = vld [vmem:[%s10] sm:$0xff]
    %v1298 = vld [vmem:[%s10 + $0x8] sm:$0xff]
    %v1299 = vld [vmem:[%s10 + $0x10] sm:$0xff]
    %v1300 = vld [vmem:[%s10 + $0x18] sm:$0xff]
    %v1301 = vld [vmem:[%s10 + $0x20] sm:$0xff]
    %v1302 = vld [vmem:[%s8] sm:$0xff]
    %1304 = vset.pattern.permute.xlu0 0
    %1305 = vperm.xlu0 %1304, %v1302
    %v1306 = vpop.permute.xlu0 %1305
    %v1309 = vsel %vm1170, %v1296, 0
    %1311 = vmatpush.msra.mxu0 0.0
    %1312 = vmatpush.msra.mxu0 0.0
    %1313 = vmatpush.msra.mxu0 0.0
    %1314 = vmatpush.msra.mxu0 0.0
    %1315 = vmatpush.msra.mxu0 0.0
    %1316 = vmatpush.msra.mxu0 0.0
    %1317 = vmatpush.msra.mxu0 0.0
    %1318 = vmatpush.msra.mxu0 0.0
    %1319 = vmatpush.msra.mxu0 0.0
    %1320 = vmatpush.msra.mxu0 0.0
    %1321 = vmatpush.msra.mxu0 0.0
    %1322 = vmatpush.msra.mxu0 %v1301
    %1323 = vmatpush.msra.mxu0 %v1300
    %1324 = vmatpush.msra.mxu0 %v1299
    %1325 = vmatpush.msra.mxu0 %v1298
    %1326 = vmatpush.msra.mxu0 %v1297
    %1327 = vmatmul.f32.gmra.mxu0 %v1309
    %v1328 = vpop.f32.mrf.mxu0
    %v1329 = vadd.f32 %v1306, %v1328
    %1330 = vdwg.mxu0
    %vm1331 = vcmp.gt.f32.partialorder %v1329, 0.0
    %v1332 = vmin.f32 %v1329, 0.0
    %v1333 = vmul.f32 %v1332, 1.442695
    %v1334 = vpow.pop %v1333
    %v1335 = vsub.f32 %v1334, 1.0
    %v1336 = vsel %vm1331, %v1329, %v1335
    %v1337 = vld [vmem:[%s11] sm:$0xff]
    %v1338 = vld [vmem:[%s11 + $0x8] sm:$0xff]
    %vm1339 = vcmask 64512
    %v1341 = vsel %vm1339, %v1337, 0
    %v1344 = vsel %vm1339, %v1338, 0
    %1346 = vmatpush.msra.mxu0 0.0
    %1347 = vmatpush.msra.mxu0 0.0
    %1348 = vmatpush.msra.mxu0 0.0
    %1349 = vmatpush.msra.mxu0 0.0
    %1350 = vmatpush.msra.mxu0 0.0
    %1351 = vmatpush.msra.mxu0 0.0
    %1352 = vmatpush.msra.mxu0 0.0
    %1353 = vmatpush.msra.mxu0 0.0
    %1354 = vmatpush.msra.mxu0 0.0
    %1355 = vmatpush.msra.mxu0 0.0
    %1356 = vmatpush.msra.mxu0 0.0
    %1357 = vmatpush.msra.mxu0 0.0
    %1358 = vmatpush.msra.mxu0 0.0
    %1359 = vmatpush.msra.mxu0 0.0
    %1360 = vmatpush.msra.mxu0 0.0
    %1361 = vmatpush.msra.mxu0 %v1336
    %1362 = vmatmul.f32.gmra.mxu0 %v1341
    %v1363 = vpop.f32.mrf.mxu0
    %v1364 = vadd.f32 0.0, %v1363
    %1365 = vmatmul.f32.gmra.mxu0 %v1344
    %v1366 = vpop.f32.mrf.mxu0
    %v1367 = vadd.f32 0.0, %v1366
    %1368 = vdwg.mxu0
    %v1369 = vld [vmem:[%s12] sm:$0xff]
    %v1370 = vld [vmem:[%s12 + $0x8] sm:$0x3]
    %vm1371 = vcmask 80896
    %v1373 = vsel %vm1371, %v1364, 0
    %v1376 = vsel %vm1371, %v1367, 0
    %vm1378 = vcmask 1041408
    %v1380 = vsel %vm1378, %v1370, 0
    %1382 = vmatpush.msra.mxu0 0.0
    %1383 = vmatpush.msra.mxu0 0.0
    %1384 = vmatpush.msra.mxu0 0.0
    %1385 = vmatpush.msra.mxu0 0.0
    %1386 = vmatpush.msra.mxu0 0.0
    %1387 = vmatpush.msra.mxu0 0.0
    %1388 = vmatpush.msra.mxu0 0.0
    %1389 = vmatpush.msra.mxu0 0.0
    %1390 = vmatpush.msra.mxu0 0.0
    %1391 = vmatpush.msra.mxu0 0.0
    %1392 = vmatpush.msra.mxu0 0.0
    %1393 = vmatpush.msra.mxu0 0.0
    %1394 = vmatpush.msra.mxu0 0.0
    %1395 = vmatpush.msra.mxu0 0.0
    %1396 = vmatpush.msra.mxu0 %v1380
    %1397 = vmatpush.msra.mxu0 %v1369
    %1398 = vmatmul.f32.gmra.mxu0 %v1373
    %v1399 = vpop.f32.mrf.mxu0
    %v1400 = vadd.f32 0.0, %v1399
    %1401 = vmatmul.f32.gmra.mxu0 %v1376
    %v1402 = vpop.f32.mrf.mxu0
    %v1403 = vadd.f32 0.0, %v1402
    %1404 = vdwg.mxu0
    %v1405 = vld [vmem:[%s13] sm:$0xff]
    %v1406 = vld [vmem:[%s13 + $0x8] sm:$0xff]
    %v1407 = vmul.f32 %v1400, %v1405
    %v1408 = vmul.f32 %v1403, %v1406
    %v1409 = vld [vmem:[%s14] sm:$0xff]
    %v1410 = vld [vmem:[%s14 + $0x8] sm:$0xff]
    %v1411 = vld [vmem:[%s15] sm:$0xff]
    %v1412 = vld [vmem:[%s15 + $0x8] sm:$0xff]
    %1414 = vset.pattern.permute.xlu0 0
    %1415 = vperm.xlu0 %1414, %v1411
    %v1416 = vpop.permute.xlu0 %1415
    %1419 = vset.pattern.permute.xlu0 0
    %1420 = vperm.xlu0 %1419, %v1412
    %v1421 = vpop.permute.xlu0 %1420
    %v1424 = vsel %vm179, %v1407, 0
    %v1427 = vsel %vm179, %v1408, 0
    %1429 = vmatpush.msra.mxu0 0.0
    %1430 = vmatpush.msra.mxu0 0.0
    %1431 = vmatpush.msra.mxu0 0.0
    %1432 = vmatpush.msra.mxu0 0.0
    %1433 = vmatpush.msra.mxu0 0.0
    %1434 = vmatpush.msra.mxu0 0.0
    %1435 = vmatpush.msra.mxu0 0.0
    %1436 = vmatpush.msra.mxu0 0.0
    %1437 = vmatpush.msra.mxu0 0.0
    %1438 = vmatpush.msra.mxu0 0.0
    %1439 = vmatpush.msra.mxu0 0.0
    %1440 = vmatpush.msra.mxu0 0.0
    %1441 = vmatpush.msra.mxu0 0.0
    %1442 = vmatpush.msra.mxu0 0.0
    %1443 = vmatpush.msra.mxu0 %v1410
    %1444 = vmatpush.msra.mxu0 %v1409
    %1445 = vmatmul.f32.gmra.mxu0 %v1424
    %v1446 = vpop.f32.mrf.mxu0
    %v1447 = vadd.f32 %v1416, %v1446
    %1448 = vmatmul.f32.gmra.mxu0 %v1427
    %v1449 = vpop.f32.mrf.mxu0
    %v1450 = vadd.f32 %v1421, %v1449
    %1451 = vdwg.mxu0
    %vm1452 = vcmp.gt.f32.partialorder %v1447, 0.0
    %vm1453 = vcmp.gt.f32.partialorder %v1450, 0.0
    %v1454 = vmin.f32 %v1447, 0.0
    %v1455 = vmin.f32 %v1450, 0.0
    %v1456 = vmul.f32 %v1454, 1.442695
    %v1457 = vpow.pop %v1456
    %v1458 = vmul.f32 %v1455, 1.442695
    %v1459 = vpow.pop %v1458
    %v1460 = vsub.f32 %v1457, 1.0
    %v1461 = vsub.f32 %v1459, 1.0
    %v1462 = vsel %vm1452, %v1447, %v1460
    %v1463 = vsel %vm1453, %v1450, %v1461
    %1464 = vst.msk [vmem:[%s16] sm:$0xff] %vm1268, %v1462
    %1465 = vst.msk [vmem:[%s16 + $0x8] sm:$0xff] %vm1268, %v1463
    // Predicated region
    $region70: #{tpu_custom_call.1} parent=1 // pred_check
      _
    $region71: #{tpu_custom_call.1} parent=1 // pred_check_branch
      %1467 = sbr.rel (0) target = $region73
    $region72: #{tpu_custom_call.1} parent=1 // pred_region
      _
    $region73: #{tpu_custom_call.1} parent=1 // pred_fallthru
      _
    // Predicated region
    $region74: #{tpu_custom_call.1} parent=1 // pred_check
      _
    $region75: #{tpu_custom_call.1} parent=1 // pred_check_branch
      %1469 = sbr.rel (0) target = $region77
    $region76: #{tpu_custom_call.1} parent=1 // pred_region
      %1471 = vsyncadd [#allocation4], 0
      %s1473 = sshll.u32 [#allocation5], 4
      %s1474 = int_to_ptr.vmem [resolvable:$true] %s1473
      %s1475 = sshll.u32 %s17, 4
      %s1476 = int_to_ptr.hbm [resolvable:$true] %s1475
      %1478 = dma.vmem_to_hbm [thread:$0]  %s1474, 512, %s1476, [#allocation4]
    $region77: #{tpu_custom_call.1} parent=1 // pred_fallthru
      _
    // Predicated region
    $region78: #{tpu_custom_call.1} parent=1 // pred_check
      _
    $region79: #{tpu_custom_call.1} parent=1 // pred_check_branch
      %1480 = sbr.rel (0) target = $region81
    $region80: #{tpu_custom_call.1} parent=1 // pred_region
      _
    $region81: #{tpu_custom_call.1} parent=1 // pred_fallthru
      _
    // Predicated region
    $region82: #{tpu_custom_call.1} parent=1 // pred_check
      _
    $region83: #{tpu_custom_call.1} parent=1 // pred_check_branch
      %1482 = sbr.rel (0) target = $region85
    $region84: #{tpu_custom_call.1} parent=1 // pred_region
      %1484 = dma.done [#allocation4], 512
    $region85: #{tpu_custom_call.1} parent=1 // pred_fallthru
      _
    %1485 = vsyncpa [#allocation3], 1
    %1486 = vsyncpa [#allocation4], 1

</llo_original>
